<compile_context>
chip_gen: v6e
topology: v6e:2x2x1
jax: 0.10.0
libtpu: 0.0.40
codegen_flags: <defaults>
</compile_context>

<pallas_src>
import functools
import math

import jax
import jax.numpy as jnp
from jax.experimental import pallas as pl
from jax.experimental.pallas import tpu as pltpu

LN_EPS = 1e-5  # TODO(synk): nn.LayerNorm default eps; some forks use a custom 1e-12 LayerNorm.


def encoder_layer_kernel(
    n_head,
    q_tile,
    x_ref,                        # (1, S,  D)  bf16  full sequence (queries/keys/values/residual)
    wqkv_ref,                     # (D, 3D)     bf16  [Wq | Wk | Wv]
    bqkv_ref,                     # (1, 3D)     f32
    wo_ref,                       # (D, D)      bf16  (rows = concatenated heads)
    w1_ref,                       # (D, F)      bf16
    bf1_ref,                      # (1, F)      f32
    w2_ref,                       # (F, D)      bf16
    vecs_ref,                     # (6, D)      f32   rows: bo, g1, be1, bf2, g2, be2
    o_ref,                        # (1, TQ, D)  bf16
):
    D = x_ref.shape[-1]
    dh = D // n_head
    scale = 1.0 / math.sqrt(dh)

    x_seq = x_ref[0]                                              # (S, D) bf16
    q_start = pl.multiple_of(pl.program_id(1) * q_tile, q_tile)
    xq = x_ref[0, pl.ds(q_start, q_tile), :]                      # (TQ, D) bf16 query tile

    wqkv = wqkv_ref[...]
    bqkv = bqkv_ref[...]

    # --- fused QKV projections (bf16 MXU, f32 accumulation) ---
    q = jnp.dot(xq, wqkv[:, :D], preferred_element_type=jnp.float32) + bqkv[:, :D]      # (TQ, D)
    q = q * scale
    kv = jnp.dot(x_seq, wqkv[:, D:], preferred_element_type=jnp.float32) + bqkv[:, D:]  # (S, 2D)
    k = kv[:, :D]
    v = kv[:, D:]

    # --- per-head scaled-dot-product attention; concat heads, single output projection ---
    # TODO(synk): src_mask unsupported (test path calls with src_mask=None); would be a
    #             jnp.where on `s` before the softmax.
    ctx_heads = []
    for h in range(n_head):                           # static unroll over heads
        sl = slice(h * dh, (h + 1) * dh)
        qh = q[:, sl].astype(jnp.bfloat16)
        kh = k[:, sl].astype(jnp.bfloat16)
        vh = v[:, sl].astype(jnp.bfloat16)
        s = jnp.dot(qh, kh.T, preferred_element_type=jnp.float32)        # (TQ, S)
        s = s - jnp.max(s, axis=-1, keepdims=True)
        p = jnp.exp(s)
        p = p * pl.reciprocal(jnp.sum(p, axis=-1, keepdims=True), approx=True)
        ctx_heads.append(jnp.dot(p.astype(jnp.bfloat16), vh,
                                 preferred_element_type=jnp.float32))    # (TQ, dh)
    ctx = jnp.concatenate(ctx_heads, axis=-1)                            # (TQ, D) f32

    bo = vecs_ref[0:1, :]
    g1 = vecs_ref[1:2, :]
    be1 = vecs_ref[2:3, :]
    bf2 = vecs_ref[3:4, :]
    g2 = vecs_ref[4:5, :]
    be2 = vecs_ref[5:6, :]

    attn_out = jnp.dot(ctx.astype(jnp.bfloat16), wo_ref[...],
                       preferred_element_type=jnp.float32) + bo          # (TQ, D)

    def layer_norm(y, g, b):
        mean = jnp.mean(y, axis=-1, keepdims=True)
        var = jnp.mean((y - mean) ** 2, axis=-1, keepdims=True)
        return (y - mean) * jax.lax.rsqrt(var + LN_EPS) * g + b

    # residual + LN1 (f32)
    h1 = layer_norm(xq.astype(jnp.float32) + attn_out, g1, be1)

    # position-wise FFN: Linear -> ReLU -> Linear (dropout == identity at eval)
    f = jnp.dot(h1.astype(jnp.bfloat16), w1_ref[...],
                preferred_element_type=jnp.float32) + bf1_ref[...]
    f = jnp.maximum(f, 0.0)
    f = jnp.dot(f.astype(jnp.bfloat16), w2_ref[...],
                preferred_element_type=jnp.float32) + bf2

    # residual + LN2
    h2 = layer_norm(h1 + f, g2, be2)
    o_ref[0] = h2.astype(o_ref.dtype)


_WEIGHT_ORDER = ("wqkv", "bqkv", "wo", "w1", "bf1", "w2", "vecs")


def _pick_q_tile(S):
    # query-tile size: large, lane/sublane friendly, and dividing S (keeps boundary blocks exact)
    for t in (256, 128):
        if S % t == 0:
            return t
    return S


def encoder_layer_pallas(x, lp, n_head):
    B, S, D = x.shape
    TQ = _pick_q_tile(S)
    NQ = S // TQ
    weights = [lp[key] for key in _WEIGHT_ORDER]

    def const_spec(arr):
        n = arr.ndim
        # whole array per grid step; constant index map -> block DMA'd once and reused
        # TODO(synk): on v7x consider pipeline_mode=pl.Buffered(1) for these constant-index
        #             weight blocks / tune vmem_limit_bytes when D, F are large.
        return pl.BlockSpec(arr.shape, lambda b, q, _n=n: (0,) * _n)

    kernel = functools.partial(encoder_layer_kernel, n_head, TQ)

    return pl.pallas_call(
        kernel,
        out_shape=jax.ShapeDtypeStruct((B, S, D), x.dtype),
        grid_spec=pltpu.PrefetchScalarGridSpec(
            num_scalar_prefetch=0,
            grid=(B, NQ),
            in_specs=[
                pl.BlockSpec((1, S, D), lambda b, q: (b, 0, 0)),   # full sequence (Q/K/V source)
            ] + [const_spec(w) for w in weights],
            out_specs=pl.BlockSpec((1, TQ, D), lambda b, q: (b, q, 0)),
        ),
        compiler_params=pltpu.CompilerParams(
            dimension_semantics=("parallel", "parallel")),
    )(x, *weights)


def sinusoidal_pe(max_len, d_model, base):
    pos = jnp.arange(max_len, dtype=jnp.float32)[:, None]
    i = jnp.arange(0, d_model, 2, dtype=jnp.float32)
    angle = pos / (base ** (i / d_model))
    pe = jnp.zeros((max_len, d_model), jnp.float32)
    pe = pe.at[:, 0::2].set(jnp.sin(angle))
    pe = pe.at[:, 1::2].set(jnp.cos(angle))
    return pe


def init_params(key, *, vocab_size, d_model, max_len, base, n_head, ffn_hidden, n_layers):
    D, F = d_model, ffn_hidden
    keys = jax.random.split(key, 1 + n_layers)
    emb = jax.random.normal(keys[0], (vocab_size, d_model), jnp.float32) * 0.02

    def lin(kk, fan_in, shape):
        bound = 1.0 / math.sqrt(fan_in)
        return jax.random.uniform(kk, shape, jnp.float32, -bound, bound)

    layers = []
    for l in range(n_layers):
        k = jax.random.split(keys[1 + l], 12)
        # fused, lane-dense layouts; matmul weights stored in bf16
        wqkv = jnp.concatenate(
            [lin(k[0], D, (D, D)), lin(k[1], D, (D, D)), lin(k[2], D, (D, D))],
            axis=1).astype(jnp.bfloat16)                                   # (D, 3D)
        bqkv = jnp.concatenate(
            [lin(k[3], D, (1, D)), lin(k[4], D, (1, D)), lin(k[5], D, (1, D))],
            axis=1)                                                        # (1, 3D) f32
        wo = lin(k[6], D, (D, D)).astype(jnp.bfloat16)                     # (H*dh, D)
        bo = lin(k[7], D, (1, D))
        w1 = lin(k[8], D, (D, F)).astype(jnp.bfloat16)
        bf1 = lin(k[9], D, (1, F))
        w2 = lin(k[10], F, (F, D)).astype(jnp.bfloat16)
        bf2 = lin(k[11], F, (1, D))
        g1 = jnp.ones((1, D), jnp.float32)
        be1 = jnp.zeros((1, D), jnp.float32)
        g2 = jnp.ones((1, D), jnp.float32)
        be2 = jnp.zeros((1, D), jnp.float32)
        vecs = jnp.concatenate([bo, g1, be1, bf2, g2, be2], axis=0)        # (6, D) f32
        layers.append(dict(wqkv=wqkv, bqkv=bqkv, wo=wo, w1=w1, bf1=bf1, w2=w2, vecs=vecs))
    return dict(emb=emb, pe=sinusoidal_pe(max_len, d_model, base), layers=layers)


def encoder_forward(token_ids, params, n_head):
    # glue: embedding gather + positional encoding add (dropout identity at eval)
    # TODO(synk): fuse the gather + PE add into the first layer's kernel via scalar-prefetched
    #             token ids (Element/gather BlockSpec) to save one HBM round-trip per call.
    B, S = token_ids.shape
    x = params["emb"][token_ids] + params["pe"][:S][None, :, :]            # (B, S, D) f32
    x = x.astype(jnp.bfloat16)                                             # bf16 between layers
    for lp in params["layers"]:
        x = encoder_layer_pallas(x, lp, n_head)
    return x.astype(jnp.float32)


if __name__ == "__main__":
    # small shapes consistent with the module
    VOCAB, D_MODEL, MAX_LEN = 50, 32, 16
    N_HEAD, FFN_HIDDEN, N_LAYERS = 4, 64, 2
    BASE, DROPOUT = 10000.0, 0.0
    B, S = 2, 8

    key = jax.random.PRNGKey(0)
    k_param, k_ids = jax.random.split(key)
    params = init_params(k_param, vocab_size=VOCAB, d_model=D_MODEL, max_len=MAX_LEN,
                         base=BASE, n_head=N_HEAD, ffn_hidden=FFN_HIDDEN, n_layers=N_LAYERS)
    token_ids = jax.random.randint(k_ids, (B, S), 0, VOCAB, dtype=jnp.int32)

    out = encoder_forward(token_ids, params, N_HEAD)
    jax.block_until_ready(out)
    assert out.shape == (B, S, D_MODEL) and out.dtype == jnp.float32
    print("KERNEL_OK")
</pallas_src>

<mosaic_0001>
module attributes {stable_mosaic.version = 11 : i64} {
  func.func @encoder_layer_kernel(%arg0: i32, %arg1: i32, %arg2: memref<1x8x32xbf16, #tpu.memory_space<vmem>>, %arg3: memref<32x96xbf16, #tpu.memory_space<vmem>>, %arg4: memref<1x96xf32, #tpu.memory_space<vmem>>, %arg5: memref<32x32xbf16, #tpu.memory_space<vmem>>, %arg6: memref<32x64xbf16, #tpu.memory_space<vmem>>, %arg7: memref<1x64xf32, #tpu.memory_space<vmem>>, %arg8: memref<64x32xbf16, #tpu.memory_space<vmem>>, %arg9: memref<6x32xf32, #tpu.memory_space<vmem>>, %arg10: memref<1x8x32xbf16, #tpu.memory_space<vmem>>) attributes {dimension_semantics = [#tpu.dimension_semantics<parallel>, #tpu.dimension_semantics<parallel>], iteration_bounds = array<i64: 2, 1>, scalar_prefetch = 0 : i64, scratch_operands = 0 : i64, tpu.core_type = #tpu.core_type<tc>, window_params = [{transform_indices = @transform_0, window_bounds = array<i64: 1, 8, 32>}, {pipeline_mode = #tpu.pipeline_mode<synchronous>, transform_indices = @transform_1, window_bounds = array<i64: 32, 96>}, {pipeline_mode = #tpu.pipeline_mode<synchronous>, transform_indices = @transform_2, window_bounds = array<i64: 1, 96>}, {pipeline_mode = #tpu.pipeline_mode<synchronous>, transform_indices = @transform_3, window_bounds = array<i64: 32, 32>}, {pipeline_mode = #tpu.pipeline_mode<synchronous>, transform_indices = @transform_4, window_bounds = array<i64: 32, 64>}, {pipeline_mode = #tpu.pipeline_mode<synchronous>, transform_indices = @transform_5, window_bounds = array<i64: 1, 64>}, {pipeline_mode = #tpu.pipeline_mode<synchronous>, transform_indices = @transform_6, window_bounds = array<i64: 64, 32>}, {pipeline_mode = #tpu.pipeline_mode<synchronous>, transform_indices = @transform_7, window_bounds = array<i64: 6, 32>}, {transform_indices = @transform_8, window_bounds = array<i64: 1, 8, 32>}]} {
    %c0 = arith.constant 0 : index
    %c0_0 = arith.constant 0 : index
    %c0_1 = arith.constant 0 : index
    %0 = vector.load %arg2[%c0, %c0_0, %c0_1] : memref<1x8x32xbf16, #tpu.memory_space<vmem>>, vector<1x8x32xbf16>
    %1 = vector.shape_cast %0 : vector<1x8x32xbf16> to vector<8x32xbf16>
    %c8_i32 = arith.constant 8 : i32
    %2 = arith.muli %arg1, %c8_i32 : i32
    %3 = tpu.assume_multiple %2, 8 : i32
    %c0_2 = arith.constant 0 : index
    %4 = arith.index_cast %3 : i32 to index
    %c0_3 = arith.constant 0 : index
    %5 = vector.load %arg2[%c0_2, %4, %c0_3] : memref<1x8x32xbf16, #tpu.memory_space<vmem>>, vector<1x8x32xbf16>
    %6 = vector.shape_cast %5 : vector<1x8x32xbf16> to vector<8x32xbf16>
    %c0_4 = arith.constant 0 : index
    %c0_5 = arith.constant 0 : index
    %7 = vector.load %arg3[%c0_4, %c0_5] : memref<32x96xbf16, #tpu.memory_space<vmem>>, vector<32x96xbf16>
    %c0_6 = arith.constant 0 : index
    %c0_7 = arith.constant 0 : index
    %8 = vector.load %arg4[%c0_6, %c0_7] : memref<1x96xf32, #tpu.memory_space<vmem>>, vector<1x96xf32>
    %9 = vector.extract_strided_slice %7 {offsets = [0, 0], sizes = [32, 32], strides = [1, 1]} : vector<32x96xbf16> to vector<32x32xbf16>
    %cst = arith.constant dense<0.000000e+00> : vector<8x32xf32>
    %10 = tpu.matmul %6, %9, %cst {dimension_numbers = #tpu.dot_dimension_numbers<[1], [0], [0], [1], [0, 0, 1, 1], [], []>} : vector<8x32xbf16>, vector<32x32xbf16>, vector<8x32xf32> -> vector<8x32xf32>
    %11 = vector.extract_strided_slice %8 {offsets = [0, 0], sizes = [1, 32], strides = [1, 1]} : vector<1x96xf32> to vector<1x32xf32>
    %12 = vector.broadcast %11 : vector<1x32xf32> to vector<8x32xf32>
    %13 = arith.addf %10, %12 : vector<8x32xf32>
    %cst_8 = arith.constant 0.353553385 : f32
    %14 = vector.broadcast %cst_8 : f32 to vector<8x32xf32>
    %15 = arith.mulf %13, %14 : vector<8x32xf32>
    %16 = vector.extract_strided_slice %7 {offsets = [0, 32], sizes = [32, 64], strides = [1, 1]} : vector<32x96xbf16> to vector<32x64xbf16>
    %cst_9 = arith.constant dense<0.000000e+00> : vector<8x64xf32>
    %17 = tpu.matmul %1, %16, %cst_9 {dimension_numbers = #tpu.dot_dimension_numbers<[1], [0], [0], [1], [0, 0, 1, 1], [], []>} : vector<8x32xbf16>, vector<32x64xbf16>, vector<8x64xf32> -> vector<8x64xf32>
    %18 = vector.extract_strided_slice %8 {offsets = [0, 32], sizes = [1, 64], strides = [1, 1]} : vector<1x96xf32> to vector<1x64xf32>
    %19 = vector.broadcast %18 : vector<1x64xf32> to vector<8x64xf32>
    %20 = arith.addf %17, %19 : vector<8x64xf32>
    %21 = vector.extract_strided_slice %20 {offsets = [0, 0], sizes = [8, 32], strides = [1, 1]} : vector<8x64xf32> to vector<8x32xf32>
    %22 = vector.extract_strided_slice %20 {offsets = [0, 32], sizes = [8, 32], strides = [1, 1]} : vector<8x64xf32> to vector<8x32xf32>
    %23 = vector.extract_strided_slice %15 {offsets = [0, 0], sizes = [8, 8], strides = [1, 1]} : vector<8x32xf32> to vector<8x8xf32>
    %24 = arith.truncf %23 : vector<8x8xf32> to vector<8x8xbf16>
    %25 = vector.extract_strided_slice %21 {offsets = [0, 0], sizes = [8, 8], strides = [1, 1]} : vector<8x32xf32> to vector<8x8xf32>
    %26 = arith.truncf %25 : vector<8x8xf32> to vector<8x8xbf16>
    %27 = vector.extract_strided_slice %22 {offsets = [0, 0], sizes = [8, 8], strides = [1, 1]} : vector<8x32xf32> to vector<8x8xf32>
    %28 = arith.truncf %27 : vector<8x8xf32> to vector<8x8xbf16>
    %29 = tpu.transpose %26, [1, 0] : vector<8x8xbf16> -> vector<8x8xbf16>
    %cst_10 = arith.constant dense<0.000000e+00> : vector<8x8xf32>
    %30 = tpu.matmul %24, %29, %cst_10 {dimension_numbers = #tpu.dot_dimension_numbers<[1], [0], [0], [1], [0, 0, 1, 1], [], []>} : vector<8x8xbf16>, vector<8x8xbf16>, vector<8x8xf32> -> vector<8x8xf32>
    %cst_11 = arith.constant dense<0xFF800000> : vector<8xf32>
    %31 = vector.multi_reduction <maximumf>, %30, %cst_11 [1] : vector<8x8xf32> to vector<8xf32>
    %32 = vector.shape_cast %31 : vector<8xf32> to vector<8x1xf32>
    %33 = vector.broadcast %32 : vector<8x1xf32> to vector<8x8xf32>
    %34 = arith.subf %30, %33 : vector<8x8xf32>
    %35 = math.exp %34 : vector<8x8xf32>
    %cst_12 = arith.constant dense<0.000000e+00> : vector<8xf32>
    %36 = vector.multi_reduction <add>, %35, %cst_12 [1] : vector<8x8xf32> to vector<8xf32>
    %37 = vector.shape_cast %36 : vector<8xf32> to vector<8x1xf32>
    %38 = tpu.reciprocal %37 {approx = true} : vector<8x1xf32> -> vector<8x1xf32>
    %39 = vector.broadcast %38 : vector<8x1xf32> to vector<8x8xf32>
    %40 = arith.mulf %35, %39 : vector<8x8xf32>
    %41 = arith.truncf %40 : vector<8x8xf32> to vector<8x8xbf16>
    %cst_13 = arith.constant dense<0.000000e+00> : vector<8x8xf32>
    %42 = tpu.matmul %41, %28, %cst_13 {dimension_numbers = #tpu.dot_dimension_numbers<[1], [0], [0], [1], [0, 0, 1, 1], [], []>} : vector<8x8xbf16>, vector<8x8xbf16>, vector<8x8xf32> -> vector<8x8xf32>
    %43 = vector.extract_strided_slice %15 {offsets = [0, 8], sizes = [8, 8], strides = [1, 1]} : vector<8x32xf32> to vector<8x8xf32>
    %44 = arith.truncf %43 : vector<8x8xf32> to vector<8x8xbf16>
    %45 = vector.extract_strided_slice %21 {offsets = [0, 8], sizes = [8, 8], strides = [1, 1]} : vector<8x32xf32> to vector<8x8xf32>
    %46 = arith.truncf %45 : vector<8x8xf32> to vector<8x8xbf16>
    %47 = vector.extract_strided_slice %22 {offsets = [0, 8], sizes = [8, 8], strides = [1, 1]} : vector<8x32xf32> to vector<8x8xf32>
    %48 = arith.truncf %47 : vector<8x8xf32> to vector<8x8xbf16>
    %49 = tpu.transpose %46, [1, 0] : vector<8x8xbf16> -> vector<8x8xbf16>
    %cst_14 = arith.constant dense<0.000000e+00> : vector<8x8xf32>
    %50 = tpu.matmul %44, %49, %cst_14 {dimension_numbers = #tpu.dot_dimension_numbers<[1], [0], [0], [1], [0, 0, 1, 1], [], []>} : vector<8x8xbf16>, vector<8x8xbf16>, vector<8x8xf32> -> vector<8x8xf32>
    %cst_15 = arith.constant dense<0xFF800000> : vector<8xf32>
    %51 = vector.multi_reduction <maximumf>, %50, %cst_15 [1] : vector<8x8xf32> to vector<8xf32>
    %52 = vector.shape_cast %51 : vector<8xf32> to vector<8x1xf32>
    %53 = vector.broadcast %52 : vector<8x1xf32> to vector<8x8xf32>
    %54 = arith.subf %50, %53 : vector<8x8xf32>
    %55 = math.exp %54 : vector<8x8xf32>
    %cst_16 = arith.constant dense<0.000000e+00> : vector<8xf32>
    %56 = vector.multi_reduction <add>, %55, %cst_16 [1] : vector<8x8xf32> to vector<8xf32>
    %57 = vector.shape_cast %56 : vector<8xf32> to vector<8x1xf32>
    %58 = tpu.reciprocal %57 {approx = true} : vector<8x1xf32> -> vector<8x1xf32>
    %59 = vector.broadcast %58 : vector<8x1xf32> to vector<8x8xf32>
    %60 = arith.mulf %55, %59 : vector<8x8xf32>
    %61 = arith.truncf %60 : vector<8x8xf32> to vector<8x8xbf16>
    %cst_17 = arith.constant dense<0.000000e+00> : vector<8x8xf32>
    %62 = tpu.matmul %61, %48, %cst_17 {dimension_numbers = #tpu.dot_dimension_numbers<[1], [0], [0], [1], [0, 0, 1, 1], [], []>} : vector<8x8xbf16>, vector<8x8xbf16>, vector<8x8xf32> -> vector<8x8xf32>
    %63 = vector.extract_strided_slice %15 {offsets = [0, 16], sizes = [8, 8], strides = [1, 1]} : vector<8x32xf32> to vector<8x8xf32>
    %64 = arith.truncf %63 : vector<8x8xf32> to vector<8x8xbf16>
    %65 = vector.extract_strided_slice %21 {offsets = [0, 16], sizes = [8, 8], strides = [1, 1]} : vector<8x32xf32> to vector<8x8xf32>
    %66 = arith.truncf %65 : vector<8x8xf32> to vector<8x8xbf16>
    %67 = vector.extract_strided_slice %22 {offsets = [0, 16], sizes = [8, 8], strides = [1, 1]} : vector<8x32xf32> to vector<8x8xf32>
    %68 = arith.truncf %67 : vector<8x8xf32> to vector<8x8xbf16>
    %69 = tpu.transpose %66, [1, 0] : vector<8x8xbf16> -> vector<8x8xbf16>
    %cst_18 = arith.constant dense<0.000000e+00> : vector<8x8xf32>
    %70 = tpu.matmul %64, %69, %cst_18 {dimension_numbers = #tpu.dot_dimension_numbers<[1], [0], [0], [1], [0, 0, 1, 1], [], []>} : vector<8x8xbf16>, vector<8x8xbf16>, vector<8x8xf32> -> vector<8x8xf32>
    %cst_19 = arith.constant dense<0xFF800000> : vector<8xf32>
    %71 = vector.multi_reduction <maximumf>, %70, %cst_19 [1] : vector<8x8xf32> to vector<8xf32>
    %72 = vector.shape_cast %71 : vector<8xf32> to vector<8x1xf32>
    %73 = vector.broadcast %72 : vector<8x1xf32> to vector<8x8xf32>
    %74 = arith.subf %70, %73 : vector<8x8xf32>
    %75 = math.exp %74 : vector<8x8xf32>
    %cst_20 = arith.constant dense<0.000000e+00> : vector<8xf32>
    %76 = vector.multi_reduction <add>, %75, %cst_20 [1] : vector<8x8xf32> to vector<8xf32>
    %77 = vector.shape_cast %76 : vector<8xf32> to vector<8x1xf32>
    %78 = tpu.reciprocal %77 {approx = true} : vector<8x1xf32> -> vector<8x1xf32>
    %79 = vector.broadcast %78 : vector<8x1xf32> to vector<8x8xf32>
    %80 = arith.mulf %75, %79 : vector<8x8xf32>
    %81 = arith.truncf %80 : vector<8x8xf32> to vector<8x8xbf16>
    %cst_21 = arith.constant dense<0.000000e+00> : vector<8x8xf32>
    %82 = tpu.matmul %81, %68, %cst_21 {dimension_numbers = #tpu.dot_dimension_numbers<[1], [0], [0], [1], [0, 0, 1, 1], [], []>} : vector<8x8xbf16>, vector<8x8xbf16>, vector<8x8xf32> -> vector<8x8xf32>
    %83 = vector.extract_strided_slice %15 {offsets = [0, 24], sizes = [8, 8], strides = [1, 1]} : vector<8x32xf32> to vector<8x8xf32>
    %84 = arith.truncf %83 : vector<8x8xf32> to vector<8x8xbf16>
    %85 = vector.extract_strided_slice %21 {offsets = [0, 24], sizes = [8, 8], strides = [1, 1]} : vector<8x32xf32> to vector<8x8xf32>
    %86 = arith.truncf %85 : vector<8x8xf32> to vector<8x8xbf16>
    %87 = vector.extract_strided_slice %22 {offsets = [0, 24], sizes = [8, 8], strides = [1, 1]} : vector<8x32xf32> to vector<8x8xf32>
    %88 = arith.truncf %87 : vector<8x8xf32> to vector<8x8xbf16>
    %89 = tpu.transpose %86, [1, 0] : vector<8x8xbf16> -> vector<8x8xbf16>
    %cst_22 = arith.constant dense<0.000000e+00> : vector<8x8xf32>
    %90 = tpu.matmul %84, %89, %cst_22 {dimension_numbers = #tpu.dot_dimension_numbers<[1], [0], [0], [1], [0, 0, 1, 1], [], []>} : vector<8x8xbf16>, vector<8x8xbf16>, vector<8x8xf32> -> vector<8x8xf32>
    %cst_23 = arith.constant dense<0xFF800000> : vector<8xf32>
    %91 = vector.multi_reduction <maximumf>, %90, %cst_23 [1] : vector<8x8xf32> to vector<8xf32>
    %92 = vector.shape_cast %91 : vector<8xf32> to vector<8x1xf32>
    %93 = vector.broadcast %92 : vector<8x1xf32> to vector<8x8xf32>
    %94 = arith.subf %90, %93 : vector<8x8xf32>
    %95 = math.exp %94 : vector<8x8xf32>
    %cst_24 = arith.constant dense<0.000000e+00> : vector<8xf32>
    %96 = vector.multi_reduction <add>, %95, %cst_24 [1] : vector<8x8xf32> to vector<8xf32>
    %97 = vector.shape_cast %96 : vector<8xf32> to vector<8x1xf32>
    %98 = tpu.reciprocal %97 {approx = true} : vector<8x1xf32> -> vector<8x1xf32>
    %99 = vector.broadcast %98 : vector<8x1xf32> to vector<8x8xf32>
    %100 = arith.mulf %95, %99 : vector<8x8xf32>
    %101 = arith.truncf %100 : vector<8x8xf32> to vector<8x8xbf16>
    %cst_25 = arith.constant dense<0.000000e+00> : vector<8x8xf32>
    %102 = tpu.matmul %101, %88, %cst_25 {dimension_numbers = #tpu.dot_dimension_numbers<[1], [0], [0], [1], [0, 0, 1, 1], [], []>} : vector<8x8xbf16>, vector<8x8xbf16>, vector<8x8xf32> -> vector<8x8xf32>
    %103 = tpu.concatenate %42, %62, %82, %102 in 1 : vector<8x8xf32>, vector<8x8xf32>, vector<8x8xf32>, vector<8x8xf32> -> vector<8x32xf32>
    %c0_26 = arith.constant 0 : index
    %c0_27 = arith.constant 0 : index
    %104 = vector.load %arg9[%c0_26, %c0_27] : memref<6x32xf32, #tpu.memory_space<vmem>>, vector<1x32xf32>
    %c1 = arith.constant 1 : index
    %c0_28 = arith.constant 0 : index
    %105 = vector.load %arg9[%c1, %c0_28] : memref<6x32xf32, #tpu.memory_space<vmem>>, vector<1x32xf32>
    %c2 = arith.constant 2 : index
    %c0_29 = arith.constant 0 : index
    %106 = vector.load %arg9[%c2, %c0_29] : memref<6x32xf32, #tpu.memory_space<vmem>>, vector<1x32xf32>
    %c3 = arith.constant 3 : index
    %c0_30 = arith.constant 0 : index
    %107 = vector.load %arg9[%c3, %c0_30] : memref<6x32xf32, #tpu.memory_space<vmem>>, vector<1x32xf32>
    %c4 = arith.constant 4 : index
    %c0_31 = arith.constant 0 : index
    %108 = vector.load %arg9[%c4, %c0_31] : memref<6x32xf32, #tpu.memory_space<vmem>>, vector<1x32xf32>
    %c5 = arith.constant 5 : index
    %c0_32 = arith.constant 0 : index
    %109 = vector.load %arg9[%c5, %c0_32] : memref<6x32xf32, #tpu.memory_space<vmem>>, vector<1x32xf32>
    %110 = arith.truncf %103 : vector<8x32xf32> to vector<8x32xbf16>
    %c0_33 = arith.constant 0 : index
    %c0_34 = arith.constant 0 : index
    %111 = vector.load %arg5[%c0_33, %c0_34] : memref<32x32xbf16, #tpu.memory_space<vmem>>, vector<32x32xbf16>
    %cst_35 = arith.constant dense<0.000000e+00> : vector<8x32xf32>
    %112 = tpu.matmul %110, %111, %cst_35 {dimension_numbers = #tpu.dot_dimension_numbers<[1], [0], [0], [1], [0, 0, 1, 1], [], []>} : vector<8x32xbf16>, vector<32x32xbf16>, vector<8x32xf32> -> vector<8x32xf32>
    %113 = vector.broadcast %104 : vector<1x32xf32> to vector<8x32xf32>
    %114 = arith.addf %112, %113 : vector<8x32xf32>
    %115 = arith.extf %6 : vector<8x32xbf16> to vector<8x32xf32>
    %116 = arith.addf %115, %114 : vector<8x32xf32>
    %cst_36 = arith.constant dense<0.000000e+00> : vector<8xf32>
    %117 = vector.multi_reduction <add>, %116, %cst_36 [1] : vector<8x32xf32> to vector<8xf32>
    %118 = vector.shape_cast %117 : vector<8xf32> to vector<8x1xf32>
    %cst_37 = arith.constant 3.200000e+01 : f32
    %119 = vector.broadcast %cst_37 : f32 to vector<8x1xf32>
    %120 = arith.divf %118, %119 : vector<8x1xf32>
    %121 = vector.broadcast %120 : vector<8x1xf32> to vector<8x32xf32>
    %122 = arith.subf %116, %121 : vector<8x32xf32>
    %123 = arith.mulf %122, %122 : vector<8x32xf32>
    %cst_38 = arith.constant dense<0.000000e+00> : vector<8xf32>
    %124 = vector.multi_reduction <add>, %123, %cst_38 [1] : vector<8x32xf32> to vector<8xf32>
    %125 = vector.shape_cast %124 : vector<8xf32> to vector<8x1xf32>
    %cst_39 = arith.constant 3.200000e+01 : f32
    %126 = vector.broadcast %cst_39 : f32 to vector<8x1xf32>
    %127 = arith.divf %125, %126 : vector<8x1xf32>
    %128 = vector.broadcast %120 : vector<8x1xf32> to vector<8x32xf32>
    %129 = arith.subf %116, %128 : vector<8x32xf32>
    %cst_40 = arith.constant 9.99999974E-6 : f32
    %130 = vector.broadcast %cst_40 : f32 to vector<8x1xf32>
    %131 = arith.addf %127, %130 : vector<8x1xf32>
    %132 = math.rsqrt %131 : vector<8x1xf32>
    %133 = vector.broadcast %132 : vector<8x1xf32> to vector<8x32xf32>
    %134 = arith.mulf %129, %133 : vector<8x32xf32>
    %135 = vector.broadcast %105 : vector<1x32xf32> to vector<8x32xf32>
    %136 = arith.mulf %134, %135 : vector<8x32xf32>
    %137 = vector.broadcast %106 : vector<1x32xf32> to vector<8x32xf32>
    %138 = arith.addf %136, %137 : vector<8x32xf32>
    %139 = arith.truncf %138 : vector<8x32xf32> to vector<8x32xbf16>
    %c0_41 = arith.constant 0 : index
    %c0_42 = arith.constant 0 : index
    %140 = vector.load %arg6[%c0_41, %c0_42] : memref<32x64xbf16, #tpu.memory_space<vmem>>, vector<32x64xbf16>
    %cst_43 = arith.constant dense<0.000000e+00> : vector<8x64xf32>
    %141 = tpu.matmul %139, %140, %cst_43 {dimension_numbers = #tpu.dot_dimension_numbers<[1], [0], [0], [1], [0, 0, 1, 1], [], []>} : vector<8x32xbf16>, vector<32x64xbf16>, vector<8x64xf32> -> vector<8x64xf32>
    %c0_44 = arith.constant 0 : index
    %c0_45 = arith.constant 0 : index
    %142 = vector.load %arg7[%c0_44, %c0_45] : memref<1x64xf32, #tpu.memory_space<vmem>>, vector<1x64xf32>
    %143 = vector.broadcast %142 : vector<1x64xf32> to vector<8x64xf32>
    %144 = arith.addf %141, %143 : vector<8x64xf32>
    %cst_46 = arith.constant 0.000000e+00 : f32
    %145 = vector.broadcast %cst_46 : f32 to vector<8x64xf32>
    %146 = arith.maximumf %144, %145 : vector<8x64xf32>
    %147 = arith.truncf %146 : vector<8x64xf32> to vector<8x64xbf16>
    %c0_47 = arith.constant 0 : index
    %c0_48 = arith.constant 0 : index
    %148 = vector.load %arg8[%c0_47, %c0_48] : memref<64x32xbf16, #tpu.memory_space<vmem>>, vector<64x32xbf16>
    %cst_49 = arith.constant dense<0.000000e+00> : vector<8x32xf32>
    %149 = tpu.matmul %147, %148, %cst_49 {dimension_numbers = #tpu.dot_dimension_numbers<[1], [0], [0], [1], [0, 0, 1, 1], [], []>} : vector<8x64xbf16>, vector<64x32xbf16>, vector<8x32xf32> -> vector<8x32xf32>
    %150 = vector.broadcast %107 : vector<1x32xf32> to vector<8x32xf32>
    %151 = arith.addf %149, %150 : vector<8x32xf32>
    %152 = arith.addf %138, %151 : vector<8x32xf32>
    %cst_50 = arith.constant dense<0.000000e+00> : vector<8xf32>
    %153 = vector.multi_reduction <add>, %152, %cst_50 [1] : vector<8x32xf32> to vector<8xf32>
    %154 = vector.shape_cast %153 : vector<8xf32> to vector<8x1xf32>
    %cst_51 = arith.constant 3.200000e+01 : f32
    %155 = vector.broadcast %cst_51 : f32 to vector<8x1xf32>
    %156 = arith.divf %154, %155 : vector<8x1xf32>
    %157 = vector.broadcast %156 : vector<8x1xf32> to vector<8x32xf32>
    %158 = arith.subf %152, %157 : vector<8x32xf32>
    %159 = arith.mulf %158, %158 : vector<8x32xf32>
    %cst_52 = arith.constant dense<0.000000e+00> : vector<8xf32>
    %160 = vector.multi_reduction <add>, %159, %cst_52 [1] : vector<8x32xf32> to vector<8xf32>
    %161 = vector.shape_cast %160 : vector<8xf32> to vector<8x1xf32>
    %cst_53 = arith.constant 3.200000e+01 : f32
    %162 = vector.broadcast %cst_53 : f32 to vector<8x1xf32>
    %163 = arith.divf %161, %162 : vector<8x1xf32>
    %164 = vector.broadcast %156 : vector<8x1xf32> to vector<8x32xf32>
    %165 = arith.subf %152, %164 : vector<8x32xf32>
    %cst_54 = arith.constant 9.99999974E-6 : f32
    %166 = vector.broadcast %cst_54 : f32 to vector<8x1xf32>
    %167 = arith.addf %163, %166 : vector<8x1xf32>
    %168 = math.rsqrt %167 : vector<8x1xf32>
    %169 = vector.broadcast %168 : vector<8x1xf32> to vector<8x32xf32>
    %170 = arith.mulf %165, %169 : vector<8x32xf32>
    %171 = vector.broadcast %108 : vector<1x32xf32> to vector<8x32xf32>
    %172 = arith.mulf %170, %171 : vector<8x32xf32>
    %173 = vector.broadcast %109 : vector<1x32xf32> to vector<8x32xf32>
    %174 = arith.addf %172, %173 : vector<8x32xf32>
    %175 = arith.truncf %174 : vector<8x32xf32> to vector<8x32xbf16>
    %c0_55 = arith.constant 0 : index
    %c0_56 = arith.constant 0 : index
    %c0_57 = arith.constant 0 : index
    %176 = vector.load %arg10[%c0_55, %c0_56, %c0_57] : memref<1x8x32xbf16, #tpu.memory_space<vmem>>, vector<1x8x32xbf16>
    %177 = vector.shape_cast %176 : vector<1x8x32xbf16> to vector<8x32xbf16>
    %178 = vector.shape_cast %175 : vector<8x32xbf16> to vector<1x8x32xbf16>
    tpu.vector_store %arg10[%c0_55, %c0_56, %c0_57], %178 {strides = array<i32>} : memref<1x8x32xbf16, #tpu.memory_space<vmem>>, vector<1x8x32xbf16>,
    return
  }
  func.func @transform_0(%arg0: i32, %arg1: i32) -> (i32, i32, i32) {
    %c0_i32 = arith.constant 0 : i32
    %c0_i32_0 = arith.constant 0 : i32
    %c0_i32_1 = arith.constant 0 : i32
    return %arg0, %c0_i32, %c0_i32_0 : i32, i32, i32
  }
  func.func @transform_1(%arg0: i32, %arg1: i32) -> (i32, i32) {
    %c0_i32 = arith.constant 0 : i32
    %c0_i32_0 = arith.constant 0 : i32
    %c0_i32_1 = arith.constant 0 : i32
    return %c0_i32, %c0_i32_0 : i32, i32
  }
  func.func @transform_2(%arg0: i32, %arg1: i32) -> (i32, i32) {
    %c0_i32 = arith.constant 0 : i32
    %c0_i32_0 = arith.constant 0 : i32
    %c0_i32_1 = arith.constant 0 : i32
    return %c0_i32, %c0_i32_0 : i32, i32
  }
  func.func @transform_3(%arg0: i32, %arg1: i32) -> (i32, i32) {
    %c0_i32 = arith.constant 0 : i32
    %c0_i32_0 = arith.constant 0 : i32
    %c0_i32_1 = arith.constant 0 : i32
    return %c0_i32, %c0_i32_0 : i32, i32
  }
  func.func @transform_4(%arg0: i32, %arg1: i32) -> (i32, i32) {
    %c0_i32 = arith.constant 0 : i32
    %c0_i32_0 = arith.constant 0 : i32
    %c0_i32_1 = arith.constant 0 : i32
    return %c0_i32, %c0_i32_0 : i32, i32
  }
  func.func @transform_5(%arg0: i32, %arg1: i32) -> (i32, i32) {
    %c0_i32 = arith.constant 0 : i32
    %c0_i32_0 = arith.constant 0 : i32
    %c0_i32_1 = arith.constant 0 : i32
    return %c0_i32, %c0_i32_0 : i32, i32
  }
  func.func @transform_6(%arg0: i32, %arg1: i32) -> (i32, i32) {
    %c0_i32 = arith.constant 0 : i32
    %c0_i32_0 = arith.constant 0 : i32
    %c0_i32_1 = arith.constant 0 : i32
    return %c0_i32, %c0_i32_0 : i32, i32
  }
  func.func @transform_7(%arg0: i32, %arg1: i32) -> (i32, i32) {
    %c0_i32 = arith.constant 0 : i32
    %c0_i32_0 = arith.constant 0 : i32
    %c0_i32_1 = arith.constant 0 : i32
    return %c0_i32, %c0_i32_0 : i32, i32
  }
  func.func @transform_8(%arg0: i32, %arg1: i32) -> (i32, i32, i32) {
    %c0_i32 = arith.constant 0 : i32
    %c0_i32_0 = arith.constant 0 : i32
    return %arg0, %arg1, %c0_i32 : i32, i32, i32
  }
}

</mosaic_0001>

<llo_original>
// kernel: tpu_custom_call.1
$region0: #{tpu_custom_call.1}
  #allocation0 [shape = 'u32[]', space=smem, size = 0x4, offset = 0x4, fixed_abs, tag = 'smem constant byte address 0x4 - core index']
  #allocation1 [shape = 'u32[144,128]{1,0:T(1,128)}', space=vmem, size = 0x12000, scoped, tag = 'internal scratch']
  %s0 = inlined_call_operand.hbm [shape: bf16[2,8,32], index: 0, kind: input, shape index: {}]
  %s1 = inlined_call_operand.vmem [shape: bf16[32,96], index: 1, kind: input, shape index: {}]
  %s2 = inlined_call_operand.vmem [shape: f32[1,96], index: 2, kind: input, shape index: {}]
  %s3 = inlined_call_operand.vmem [shape: bf16[32,32], index: 3, kind: input, shape index: {}]
  %s4 = inlined_call_operand.vmem [shape: bf16[32,64], index: 4, kind: input, shape index: {}]
  %s5 = inlined_call_operand.hbm [shape: f32[1,64], index: 5, kind: input, shape index: {}]
  %s6 = inlined_call_operand.vmem [shape: bf16[64,32], index: 6, kind: input, shape index: {}]
  %s7 = inlined_call_operand.vmem [shape: f32[6,32], index: 7, kind: input, shape index: {}]
  %s8 = inlined_call_operand.hbm [shape: bf16[2,8,32], index: 8, kind: output, shape index: {}]
  %s9 = sld [smem:[#allocation0]]
  $region73: #{tpu_custom_call.1} parent=0
    _
  %s11 = ssub.s32 1, %s9
  %s12 = scalar_select 0, %s11, %s9
  $region1: #{tpu_custom_call.1} parent=0
    #allocation2 [shape = 'u8[4096]{0}', space=vmem, size = 0x1000, scoped, tag = 'input window, operand 0']
    #allocation3 [shape = 's32[2]{0}', space=sflag, size = 0x8, scoped, tag = 'scoped memory for tpu_custom_call.1']
    #allocation4 [shape = 's32[2]{0}', space=sflag, size = 0x8, scoped, tag = 'scoped memory for tpu_custom_call.1']
    #allocation5 [shape = 'u8[512]{0}', space=vmem, size = 0x400, scoped, tag = 'input window, operand 5, single buffered']
    #allocation6 [shape = 's32[1]{0}', space=sflag, size = 0x4, scoped, tag = 'scoped memory for tpu_custom_call.1']
    #allocation7 [shape = 'u8[4096]{0}', space=vmem, size = 0x1000, scoped, tag = 'output window, operand 0']
    %13 = vsyncpa [#allocation3], 0
    %s14 = scalar_lea.sflag [#allocation3], 1
    %15 = vsyncpa %s14, 0
    %16 = vsyncpa [#allocation6], 0
    %17 = vsyncpa [#allocation4], 0
    %s18 = scalar_lea.sflag [#allocation4], 1
    %19 = vsyncpa %s18, 0
    loop: start=0, step=1, limit=4
    $region2: #{tpu_custom_call.1} parent=1 // loop_pre_header
      _
    $region3: #{tpu_custom_call.1} parent=1 // loop_header
      %s21 = sphi 0, %s25
      %p22 = scmp.ge.s32.totalorder %s21, 4
      %s28 = sphi 0, %s40
      %s29 = sphi 0, %s36
      %s30 = sphi 0, %s28
      %s31 = sphi 0, %s29
      %s32 = sphi 0, %s30
      %s33 = sphi 0, %s31
      %s43 = sphi 0, %s45
      %s46 = sphi 0, %s43
      %s47 = sphi 0, %s46
      %s63 = sphi 0, %s47
      %s67 = sphi 0, %s67
      %s69 = sphi 0, %s67
      %s70 = sphi 0, %s69
      %s84 = sphi 0, %s70
      %s88 = sphi 0, %s88
      %s90 = sphi 0, %s88
      %s91 = sphi 0, %s90
      %s105 = sphi 0, %s91
      %s109 = sphi 0, %s109
      %s111 = sphi 0, %s109
      %s112 = sphi 0, %s111
      %s126 = sphi 0, %s112
      %s130 = sphi 0, %s130
      %s132 = sphi 0, %s130
      %s133 = sphi 0, %s132
      %s147 = sphi 0, %s133
      %s151 = sphi 0, %s151
      %s153 = sphi 0, %s151
      %s154 = sphi 0, %s153
      %s168 = sphi 0, %s154
      %s172 = sphi 0, %s172
      %s174 = sphi 0, %s172
      %s175 = sphi 0, %s174
      %s189 = sphi 0, %s175
      %s193 = sphi 0, %s193
      %s195 = sphi 0, %s193
      %s196 = sphi 0, %s195
      %s210 = sphi 0, %s196
      %s218 = sphi 0, %s220
      %s221 = sphi 0, %s218
      %s222 = sphi 0, %s221
      %s238 = sphi 0, %s222
    $region4: #{tpu_custom_call.1} parent=1 // loop_header_branch
      %24 = sbr.rel (%p22) target = $region8
    $region5: #{tpu_custom_call.1} parent=1 // loop_body
      %s26 = ssub.s32 %s21, 1
      %s27 = ssub.s32 %s21, 2
      %s34 = sadd.s32 1, %s29
      %p35 = scmp.ge.s32.totalorder %s34, 1
      %s36 = scalar_select %p35, 0, %s34
      %s37 = sadd.s32 1, %s28
      %s38 = scalar_select %p35, %s37, %s28
      %p39 = scmp.ge.s32.totalorder %s38, 2
      %s40 = scalar_select %p39, 0, %s38
      %s41 = ssub.s32 %s28, %s40
      %p42 = scmp.eq.s32.totalorder %s41, 0
      %s44 = sadd.s32 %s43, 1
      %s45 = scalar_select %p42, %s43, %s44
      %p48 = pneg %p42
      %p49 = scmp.eq.s32.totalorder %s21, 1
      %p50 = por %p48, %p49
      %p51 = scmp.ne.s32.totalorder %s43, %s46
      %p52 = scmp.eq.s32.totalorder %s21, 0
      %p53 = por %p51, %p52
      %p54 = scmp.ne.s32.totalorder %s43, %s46
      %p55 = scmp.eq.s32.totalorder %s26, 1
      %p56 = por %p54, %p55
      %p57 = scmp.ne.s32.totalorder %s46, %s47
      %p58 = scmp.eq.s32.totalorder %s26, 0
      %p59 = por %p57, %p58
      %p60 = scmp.ne.s32.totalorder %s46, %s47
      %p61 = scmp.eq.s32.totalorder %s27, 1
      %p62 = por %p60, %p61
      %p64 = scmp.ne.s32.totalorder %s47, %s63
      %p65 = scmp.eq.s32.totalorder %s27, 0
      %p66 = por %p64, %p65
      %s68 = sadd.s32 %s67, 1
      %p71 = scmp.eq.s32.totalorder %s21, 1
      %p72 = scmp.ne.s32.totalorder %s67, %s69
      %p73 = scmp.eq.s32.totalorder %s21, 0
      %p74 = por %p72, %p73
      %p75 = scmp.ne.s32.totalorder %s67, %s69
      %p76 = scmp.eq.s32.totalorder %s26, 1
      %p77 = por %p75, %p76
      %p78 = scmp.ne.s32.totalorder %s69, %s70
      %p79 = scmp.eq.s32.totalorder %s26, 0
      %p80 = por %p78, %p79
      %p81 = scmp.ne.s32.totalorder %s69, %s70
      %p82 = scmp.eq.s32.totalorder %s27, 1
      %p83 = por %p81, %p82
      %p85 = scmp.ne.s32.totalorder %s70, %s84
      %p86 = scmp.eq.s32.totalorder %s27, 0
      %p87 = por %p85, %p86
      %s89 = sadd.s32 %s88, 1
      %p92 = scmp.eq.s32.totalorder %s21, 1
      %p93 = scmp.ne.s32.totalorder %s88, %s90
      %p94 = scmp.eq.s32.totalorder %s21, 0
      %p95 = por %p93, %p94
      %p96 = scmp.ne.s32.totalorder %s88, %s90
      %p97 = scmp.eq.s32.totalorder %s26, 1
      %p98 = por %p96, %p97
      %p99 = scmp.ne.s32.totalorder %s90, %s91
      %p100 = scmp.eq.s32.totalorder %s26, 0
      %p101 = por %p99, %p100
      %p102 = scmp.ne.s32.totalorder %s90, %s91
      %p103 = scmp.eq.s32.totalorder %s27, 1
      %p104 = por %p102, %p103
      %p106 = scmp.ne.s32.totalorder %s91, %s105
      %p107 = scmp.eq.s32.totalorder %s27, 0
      %p108 = por %p106, %p107
      %s110 = sadd.s32 %s109, 1
      %p113 = scmp.eq.s32.totalorder %s21, 1
      %p114 = scmp.ne.s32.totalorder %s109, %s111
      %p115 = scmp.eq.s32.totalorder %s21, 0
      %p116 = por %p114, %p115
      %p117 = scmp.ne.s32.totalorder %s109, %s111
      %p118 = scmp.eq.s32.totalorder %s26, 1
      %p119 = por %p117, %p118
      %p120 = scmp.ne.s32.totalorder %s111, %s112
      %p121 = scmp.eq.s32.totalorder %s26, 0
      %p122 = por %p120, %p121
      %p123 = scmp.ne.s32.totalorder %s111, %s112
      %p124 = scmp.eq.s32.totalorder %s27, 1
      %p125 = por %p123, %p124
      %p127 = scmp.ne.s32.totalorder %s112, %s126
      %p128 = scmp.eq.s32.totalorder %s27, 0
      %p129 = por %p127, %p128
      %s131 = sadd.s32 %s130, 1
      %p134 = scmp.eq.s32.totalorder %s21, 1
      %p135 = scmp.ne.s32.totalorder %s130, %s132
      %p136 = scmp.eq.s32.totalorder %s21, 0
      %p137 = por %p135, %p136
      %p138 = scmp.ne.s32.totalorder %s130, %s132
      %p139 = scmp.eq.s32.totalorder %s26, 1
      %p140 = por %p138, %p139
      %p141 = scmp.ne.s32.totalorder %s132, %s133
      %p142 = scmp.eq.s32.totalorder %s26, 0
      %p143 = por %p141, %p142
      %p144 = scmp.ne.s32.totalorder %s132, %s133
      %p145 = scmp.eq.s32.totalorder %s27, 1
      %p146 = por %p144, %p145
      %p148 = scmp.ne.s32.totalorder %s133, %s147
      %p149 = scmp.eq.s32.totalorder %s27, 0
      %p150 = por %p148, %p149
      %s152 = sadd.s32 %s151, 1
      %p155 = scmp.eq.s32.totalorder %s21, 1
      %p156 = scmp.ne.s32.totalorder %s151, %s153
      %p157 = scmp.eq.s32.totalorder %s21, 0
      %p158 = por %p156, %p157
      %p159 = scmp.ne.s32.totalorder %s151, %s153
      %p160 = scmp.eq.s32.totalorder %s26, 1
      %p161 = por %p159, %p160
      %p162 = scmp.ne.s32.totalorder %s153, %s154
      %p163 = scmp.eq.s32.totalorder %s26, 0
      %p164 = por %p162, %p163
      %p165 = scmp.ne.s32.totalorder %s153, %s154
      %p166 = scmp.eq.s32.totalorder %s27, 1
      %p167 = por %p165, %p166
      %p169 = scmp.ne.s32.totalorder %s154, %s168
      %p170 = scmp.eq.s32.totalorder %s27, 0
      %p171 = por %p169, %p170
      %s173 = sadd.s32 %s172, 1
      %p176 = scmp.eq.s32.totalorder %s21, 1
      %p177 = scmp.ne.s32.totalorder %s172, %s174
      %p178 = scmp.eq.s32.totalorder %s21, 0
      %p179 = por %p177, %p178
      %p180 = scmp.ne.s32.totalorder %s172, %s174
      %p181 = scmp.eq.s32.totalorder %s26, 1
      %p182 = por %p180, %p181
      %p183 = scmp.ne.s32.totalorder %s174, %s175
      %p184 = scmp.eq.s32.totalorder %s26, 0
      %p185 = por %p183, %p184
      %p186 = scmp.ne.s32.totalorder %s174, %s175
      %p187 = scmp.eq.s32.totalorder %s27, 1
      %p188 = por %p186, %p187
      %p190 = scmp.ne.s32.totalorder %s175, %s189
      %p191 = scmp.eq.s32.totalorder %s27, 0
      %p192 = por %p190, %p191
      %s194 = sadd.s32 %s193, 1
      %p197 = scmp.eq.s32.totalorder %s21, 1
      %p198 = scmp.ne.s32.totalorder %s193, %s195
      %p199 = scmp.eq.s32.totalorder %s21, 0
      %p200 = por %p198, %p199
      %p201 = scmp.ne.s32.totalorder %s193, %s195
      %p202 = scmp.eq.s32.totalorder %s26, 1
      %p203 = por %p201, %p202
      %p204 = scmp.ne.s32.totalorder %s195, %s196
      %p205 = scmp.eq.s32.totalorder %s26, 0
      %p206 = por %p204, %p205
      %p207 = scmp.ne.s32.totalorder %s195, %s196
      %p208 = scmp.eq.s32.totalorder %s27, 1
      %p209 = por %p207, %p208
      %p211 = scmp.ne.s32.totalorder %s196, %s210
      %p212 = scmp.eq.s32.totalorder %s27, 0
      %p213 = por %p211, %p212
      %s214 = ssub.s32 %s28, %s40
      %s215 = ssub.s32 %s29, %s36
      %s216 = sor.u32 %s214, %s215
      %p217 = scmp.eq.s32.totalorder %s216, 0
      %s219 = sadd.s32 %s218, 1
      %s220 = scalar_select %p217, %s218, %s219
      %p223 = pneg %p217
      %p224 = scmp.eq.s32.totalorder %s21, 1
      %p225 = por %p223, %p224
      %p226 = scmp.ne.s32.totalorder %s218, %s221
      %p227 = scmp.eq.s32.totalorder %s21, 0
      %p228 = por %p226, %p227
      %p229 = scmp.ne.s32.totalorder %s218, %s221
      %p230 = scmp.eq.s32.totalorder %s26, 1
      %p231 = por %p229, %p230
      %p232 = scmp.ne.s32.totalorder %s221, %s222
      %p233 = scmp.eq.s32.totalorder %s26, 0
      %p234 = por %p232, %p233
      %p235 = scmp.ne.s32.totalorder %s221, %s222
      %p236 = scmp.eq.s32.totalorder %s27, 1
      %p237 = por %p235, %p236
      %p239 = scmp.ne.s32.totalorder %s222, %s238
      %p240 = scmp.eq.s32.totalorder %s27, 0
      %p241 = por %p239, %p240
      %p242 = scmp.le.s32.totalorder 1, %s21
      %p243 = scmp.lt.s32.totalorder %s21, 3
      %p244 = pnand %p242, %p243
      %p245 = pneg %p244
      // Predicated region
      $region9: #{tpu_custom_call.1} parent=5 // pred_check
        _
      $region10: #{tpu_custom_call.1} parent=5 // pred_check_branch
        %247 = sbr.rel (%p244) target = $region12
      $region11: #{tpu_custom_call.1} parent=5 // pred_region
        %s248 = ssub.s32 %s21, 1
        // Predicated region
        $region13: #{tpu_custom_call.1} parent=11 // pred_check
          %p249 = pneg %p80
        $region14: #{tpu_custom_call.1} parent=11 // pred_check_branch
          %251 = sbr.rel (%p249) target = $region16
        $region15: #{tpu_custom_call.1} parent=11 // pred_region
          _
        $region16: #{tpu_custom_call.1} parent=11 // pred_fallthru
          _
        // Predicated region
        $region17: #{tpu_custom_call.1} parent=11 // pred_check
          %p252 = pneg %p101
        $region18: #{tpu_custom_call.1} parent=11 // pred_check_branch
          %254 = sbr.rel (%p252) target = $region20
        $region19: #{tpu_custom_call.1} parent=11 // pred_region
          _
        $region20: #{tpu_custom_call.1} parent=11 // pred_fallthru
          _
        // Predicated region
        $region21: #{tpu_custom_call.1} parent=11 // pred_check
          %p255 = pneg %p122
        $region22: #{tpu_custom_call.1} parent=11 // pred_check_branch
          %257 = sbr.rel (%p255) target = $region24
        $region23: #{tpu_custom_call.1} parent=11 // pred_region
          _
        $region24: #{tpu_custom_call.1} parent=11 // pred_fallthru
          _
        // Predicated region
        $region25: #{tpu_custom_call.1} parent=11 // pred_check
          %p258 = pneg %p143
        $region26: #{tpu_custom_call.1} parent=11 // pred_check_branch
          %260 = sbr.rel (%p258) target = $region28
        $region27: #{tpu_custom_call.1} parent=11 // pred_region
          _
        $region28: #{tpu_custom_call.1} parent=11 // pred_fallthru
          _
        // Predicated region
        $region29: #{tpu_custom_call.1} parent=11 // pred_check
          %p261 = pneg %p164
        $region30: #{tpu_custom_call.1} parent=11 // pred_check_branch
          %263 = sbr.rel (%p261) target = $region32
        $region31: #{tpu_custom_call.1} parent=11 // pred_region
          %s265 = ssub.s32 16, 16
          %266 = vsyncadd [#allocation6], %s265
          %s268 = sshll.u32 [#allocation5], 4
          %s269 = int_to_ptr.vmem [resolvable:$true] %s268
          %271 = dma.hbm_to_vmem [thread:$0]  %s5, 16, %s269, [#allocation6]
        $region32: #{tpu_custom_call.1} parent=11 // pred_fallthru
          _
        // Predicated region
        $region33: #{tpu_custom_call.1} parent=11 // pred_check
          %p272 = pneg %p185
        $region34: #{tpu_custom_call.1} parent=11 // pred_check_branch
          %274 = sbr.rel (%p272) target = $region36
        $region35: #{tpu_custom_call.1} parent=11 // pred_region
          _
        $region36: #{tpu_custom_call.1} parent=11 // pred_fallthru
          _
        // Predicated region
        $region37: #{tpu_custom_call.1} parent=11 // pred_check
          %p275 = pneg %p206
        $region38: #{tpu_custom_call.1} parent=11 // pred_check_branch
          %277 = sbr.rel (%p275) target = $region40
        $region39: #{tpu_custom_call.1} parent=11 // pred_region
          _
        $region40: #{tpu_custom_call.1} parent=11 // pred_fallthru
          _
      $region12: #{tpu_custom_call.1} parent=5 // pred_fallthru
        _
      %p278 = scmp.lt.s32.totalorder %s21, 2
      // Predicated region
      $region41: #{tpu_custom_call.1} parent=5 // pred_check
        %p279 = pneg %p278
      $region42: #{tpu_custom_call.1} parent=5 // pred_check_branch
        %281 = sbr.rel (%p279) target = $region44
      $region43: #{tpu_custom_call.1} parent=5 // pred_region
        // Predicated region
        $region45: #{tpu_custom_call.1} parent=43 // pred_check
          %p282 = pneg %p53
        $region46: #{tpu_custom_call.1} parent=43 // pred_check_branch
          %284 = sbr.rel (%p282) target = $region48
        $region47: #{tpu_custom_call.1} parent=43 // pred_region
          %s285 = sand.u32 %s43, 1
          %s286 = scalar_lea.sflag [#allocation3], %s285
          %s287 = sand.u32 %s43, 1
          %s288 = smul.addr %s287, 4
          %s289 = scalar_lea.vmem [#allocation2], %s288
          %s291 = ssub.s32 64, 64
          %292 = vsyncadd %s286, %s291
          %s293 = smul.addr %s28, 64
          %s294 = scalar_lea.hbm %s0, %s293
          %s296 = sshll.u32 %s289, 4
          %s297 = int_to_ptr.vmem [resolvable:$true] %s296
          %299 = dma.hbm_to_vmem [thread:$0]  %s294, 64, %s297, %s286
        $region48: #{tpu_custom_call.1} parent=43 // pred_fallthru
          _
      $region44: #{tpu_custom_call.1} parent=5 // pred_fallthru
        _
      %p300 = scmp.le.s32.totalorder 1, %s21
      %p301 = scmp.lt.s32.totalorder %s21, 3
      %p302 = pnand %p300, %p301
      %p303 = pneg %p302
      // Predicated region
      $region49: #{tpu_custom_call.1} parent=5 // pred_check
        _
      $region50: #{tpu_custom_call.1} parent=5 // pred_check_branch
        %305 = sbr.rel (%p302) target = $region52
      $region51: #{tpu_custom_call.1} parent=5 // pred_region
        %s306 = ssub.s32 %s21, 1
        %s307 = sand.u32 %s46, 1
        %s308 = scalar_lea.sflag [#allocation3], %s307
        %s309 = sand.u32 %s46, 1
        %s310 = smul.addr %s309, 4
        %s311 = scalar_lea.vmem [#allocation2], %s310
        // Predicated region
        $region53: #{tpu_custom_call.1} parent=51 // pred_check
          %p312 = pneg %p59
        $region54: #{tpu_custom_call.1} parent=51 // pred_check_branch
          %314 = sbr.rel (%p312) target = $region56
        $region55: #{tpu_custom_call.1} parent=51 // pred_region
          %315 = dma.done %s308, 64
        $region56: #{tpu_custom_call.1} parent=51 // pred_fallthru
          _
        // Predicated region
        $region57: #{tpu_custom_call.1} parent=51 // pred_check
          %p316 = pneg %p164
        $region58: #{tpu_custom_call.1} parent=51 // pred_check_branch
          %318 = sbr.rel (%p316) target = $region60
        $region59: #{tpu_custom_call.1} parent=51 // pred_region
          %319 = dma.done [#allocation6], 16
        $region60: #{tpu_custom_call.1} parent=51 // pred_fallthru
          _
        %s320 = sand.u32 %s46, 1
        %s321 = scalar_lea.sflag [#allocation3], %s320
        %s322 = sand.u32 %s46, 1
        %s323 = smul.addr %s322, 4
        %s324 = scalar_lea.vmem [#allocation2], %s323
        %p325 = pneg %p59
        %p326 = pneg %p56
        %p327 = pneg %p80
        %p328 = pneg %p77
        %p329 = pneg %p101
        %p330 = pneg %p98
        %p331 = pneg %p122
        %p332 = pneg %p119
        %p333 = pneg %p143
        %p334 = pneg %p140
        %p335 = pneg %p164
        %p336 = pneg %p161
        %p337 = pneg %p185
        %p338 = pneg %p182
        %p339 = pneg %p206
        %p340 = pneg %p203
        %p341 = pneg %p234
        %p342 = pneg %p231
        %s343 = sand.u32 %s221, 1
        %s344 = scalar_lea.sflag [#allocation4], %s343
        %s345 = sand.u32 %s221, 1
        %s346 = smul.addr %s345, 4
        %s347 = scalar_lea.vmem [#allocation7], %s346
        %v349 = vld [vmem:[%s311] sm:$0xf]
        %s350 = smul.u32 %s31, 8
        %s351 = sshra.s32 %s350, 3
        %s352 = sand.u32 %s350, 7
        %s353 = smul.addr %s351, 4
        %s354 = scalar_lea.vmem %s311, %s353 [#allocation2]
        %v355 = vld [vmem:[%s354] sm:$0xf]
        %v356 = vld [vmem:[%s1] sm:$0xf]
        %v357 = vld [vmem:[%s1 + $0x4] sm:$0xf]
        %v358 = vld [vmem:[%s1 + $0x8] sm:$0xf]
        %v359 = vld [vmem:[%s1 + $0xc] sm:$0xf]
        %v360 = vld [vmem:[%s2] sm:$0x1]
        %v362 = vlaneseq
        %v363 = vshrl.u32 %v362, 7
        %v364 = vsub.s32 0, %v363
        %v365 = vrot.slane %v360, %v364
        %v371 = vunpack.c.l.b16 %v356
        %v372 = vunpack.c.l.b16 %v357
        %v373 = vunpack.c.l.b16 %v358
        %v374 = vunpack.c.l.b16 %v359
        %v375 = vpack.c.b16 %v372, %v371
        %v376 = vpack.c.b16 %v374, %v373
        %vm379 = vcmask 261120
        %v381 = vsel %vm379, %v355, 0
        %383 = vmatprep.subr.bf16.mxu0 0
        %384 = vmatpush1.bf16.msra.mxu0 0
        %385 = vmatprep.subr.bf16.mxu0 0
        %386 = vmatpush1.bf16.msra.mxu0 0
        %387 = vmatprep.subr.bf16.mxu0 0
        %388 = vmatpush1.bf16.msra.mxu0 0
        %389 = vmatprep.subr.bf16.mxu0 0
        %390 = vmatpush1.bf16.msra.mxu0 0
        %391 = vmatprep.subr.bf16.mxu0 0
        %392 = vmatpush1.bf16.msra.mxu0 0
        %393 = vmatprep.subr.bf16.mxu0 0
        %394 = vmatpush1.bf16.msra.mxu0 0
        %395 = vmatprep.subr.bf16.mxu0 0
        %396 = vmatpush1.bf16.msra.mxu0 %v376
        %397 = vmatprep.subr.bf16.mxu0 0
        %398 = vmatpush1.bf16.msra.mxu0 %v375
        %399 = vmatprep.subr.bf16.mxu0 0
        %400 = vmatpush2.bf16.msra.mxu0 0
        %401 = vmatprep.subr.bf16.mxu0 0
        %402 = vmatpush2.bf16.msra.mxu0 0
        %403 = vmatprep.subr.bf16.mxu0 0
        %404 = vmatpush2.bf16.msra.mxu0 0
        %405 = vmatprep.subr.bf16.mxu0 0
        %406 = vmatpush2.bf16.msra.mxu0 0
        %407 = vmatprep.subr.bf16.mxu0 0
        %408 = vmatpush2.bf16.msra.mxu0 0
        %409 = vmatprep.subr.bf16.mxu0 0
        %410 = vmatpush2.bf16.msra.mxu0 0
        %411 = vmatprep.subr.bf16.mxu0 0
        %412 = vmatpush2.bf16.msra.mxu0 0
        %413 = vmatprep.subr.bf16.mxu0 0
        %414 = vmatpush2.bf16.msra.mxu0 0
        %415 = vmatprep.mubr.bf16.mxu0 0
        %416 = vmatmul.mubr.bf16.gmra.mxu0 %v381
        %v417 = vpop.f32.mrf.mxu0
        %v418 = vadd.f32 %v365, %v417
        %v419 = vpop.f32.mrf.mxu0
        %v420 = vpop.f32.mrf.mxu0
        %v421 = vpop.f32.mrf.mxu0
        %422 = vdwg.mxu0
        %v423 = vmul.f32 %v418, 0.35355338
        %424 = vrot.lane.b32.xlu0 %v375, 96
        %v425 = vpop.permute.xlu0 %424
        %426 = vrot.lane.b32.xlu0 %v376, 96
        %v427 = vpop.permute.xlu0 %426
        %430 = vrot.lane.b32.xlu0 %v365, 96
        %v431 = vpop.permute.xlu0 %430
        %v434 = vsel %vm379, %v349, 0
        %436 = vmatprep.subr.bf16.mxu0 0
        %437 = vmatpush1.bf16.msra.mxu0 0
        %438 = vmatprep.subr.bf16.mxu0 0
        %439 = vmatpush1.bf16.msra.mxu0 0
        %440 = vmatprep.subr.bf16.mxu0 0
        %441 = vmatpush1.bf16.msra.mxu0 0
        %442 = vmatprep.subr.bf16.mxu0 0
        %443 = vmatpush1.bf16.msra.mxu0 0
        %444 = vmatprep.subr.bf16.mxu0 0
        %445 = vmatpush1.bf16.msra.mxu0 0
        %446 = vmatprep.subr.bf16.mxu0 0
        %447 = vmatpush1.bf16.msra.mxu0 0
        %448 = vmatprep.subr.bf16.mxu0 0
        %449 = vmatpush1.bf16.msra.mxu0 %v427
        %450 = vmatprep.subr.bf16.mxu0 0
        %451 = vmatpush1.bf16.msra.mxu0 %v425
        %452 = vmatprep.subr.bf16.mxu0 0
        %453 = vmatpush2.bf16.msra.mxu0 0
        %454 = vmatprep.subr.bf16.mxu0 0
        %455 = vmatpush2.bf16.msra.mxu0 0
        %456 = vmatprep.subr.bf16.mxu0 0
        %457 = vmatpush2.bf16.msra.mxu0 0
        %458 = vmatprep.subr.bf16.mxu0 0
        %459 = vmatpush2.bf16.msra.mxu0 0
        %460 = vmatprep.subr.bf16.mxu0 0
        %461 = vmatpush2.bf16.msra.mxu0 0
        %462 = vmatprep.subr.bf16.mxu0 0
        %463 = vmatpush2.bf16.msra.mxu0 0
        %464 = vmatprep.subr.bf16.mxu0 0
        %465 = vmatpush2.bf16.msra.mxu0 0
        %466 = vmatprep.subr.bf16.mxu0 0
        %467 = vmatpush2.bf16.msra.mxu0 0
        %468 = vmatprep.mubr.bf16.mxu0 0
        %469 = vmatmul.mubr.bf16.gmra.mxu0 %v434
        %v470 = vpop.f32.mrf.mxu0
        %v471 = vadd.f32 %v431, %v470
        %v472 = vpop.f32.mrf.mxu0
        %v473 = vpop.f32.mrf.mxu0
        %v474 = vpop.f32.mrf.mxu0
        %475 = vdwg.mxu0
        %v476 = vpack.c.bf16 %v423, %v423
        %v477 = vpack.c.bf16 %v471, %v471
        %vm478 = vcmask 64512
        %v480 = vsel %vm478, %v476, 0
        %v483 = vsel %vm478, %v477, 0
        %485 = vmatprep.subr.bf16.mxu0 0
        %486 = vmatpush1.bf16.xpose.msra.mxu0 0
        %487 = vmatprep.subr.bf16.mxu0 0
        %488 = vmatpush1.bf16.xpose.msra.mxu0 0
        %489 = vmatprep.subr.bf16.mxu0 0
        %490 = vmatpush1.bf16.xpose.msra.mxu0 0
        %491 = vmatprep.subr.bf16.mxu0 0
        %492 = vmatpush1.bf16.xpose.msra.mxu0 0
        %493 = vmatprep.subr.bf16.mxu0 0
        %494 = vmatpush1.bf16.xpose.msra.mxu0 0
        %495 = vmatprep.subr.bf16.mxu0 0
        %496 = vmatpush1.bf16.xpose.msra.mxu0 0
        %497 = vmatprep.subr.bf16.mxu0 0
        %498 = vmatpush1.bf16.xpose.msra.mxu0 0
        %499 = vmatprep.subr.bf16.mxu0 0
        %500 = vmatpush1.bf16.xpose.msra.mxu0 %v483
        %501 = vmatprep.subr.bf16.mxu0 0
        %502 = vmatpush2.bf16.xpose.msra.mxu0 0
        %503 = vmatprep.subr.bf16.mxu0 0
        %504 = vmatpush2.bf16.xpose.msra.mxu0 0
        %505 = vmatprep.subr.bf16.mxu0 0
        %506 = vmatpush2.bf16.xpose.msra.mxu0 0
        %507 = vmatprep.subr.bf16.mxu0 0
        %508 = vmatpush2.bf16.xpose.msra.mxu0 0
        %509 = vmatprep.subr.bf16.mxu0 0
        %510 = vmatpush2.bf16.xpose.msra.mxu0 0
        %511 = vmatprep.subr.bf16.mxu0 0
        %512 = vmatpush2.bf16.xpose.msra.mxu0 0
        %513 = vmatprep.subr.bf16.mxu0 0
        %514 = vmatpush2.bf16.xpose.msra.mxu0 0
        %515 = vmatprep.subr.bf16.mxu0 0
        %516 = vmatpush2.bf16.xpose.msra.mxu0 0
        %517 = vmatprep.mubr.bf16.mxu0 0
        %518 = vmatmul.mubr.bf16.gmra.mxu0 %v480
        %v519 = vpop.f32.mrf.mxu0
        %v520 = vadd.f32 0.0, %v519
        %v521 = vpop.f32.mrf.mxu0
        %v522 = vpop.f32.mrf.mxu0
        %v523 = vpop.f32.mrf.mxu0
        %524 = vdwg.mxu0
        %v525 = vsel %vm478, %v520, -inf
        %526 = vmax.xlane.f32.xlu0 %v525
        %v527 = vpop.xlane.xlu0 %526
        %v528 = vsub.f32 %v520, %v527
        %v529 = vmul.f32 %v528, 1.442695
        %v530 = vpow.pop %v529
        %v531 = vsel %vm478, %v530, 0.0
        %532 = vadd.xlane.f32.xlu0 %v531
        %v533 = vpop.xlane.xlu0 %532
        %v534 = vrcp.pop %v533
        %v535 = vmul.f32 %v530, %v534
        %v536 = vpack.c.bf16 %v535, %v535
        %538 = vrot.lane.b32.xlu0 %v477, 96
        %v539 = vpop.permute.xlu0 %538
        %v541 = vsel %vm478, %v536, 0
        %vm543 = vcmask 1043456
        %v545 = vsel %vm543, %v539, 0
        %547 = vmatprep.subr.bf16.mxu0 0
        %548 = vmatpush1.bf16.msra.mxu0 0
        %549 = vmatprep.subr.bf16.mxu0 0
        %550 = vmatpush1.bf16.msra.mxu0 0
        %551 = vmatprep.subr.bf16.mxu0 0
        %552 = vmatpush1.bf16.msra.mxu0 0
        %553 = vmatprep.subr.bf16.mxu0 0
        %554 = vmatpush1.bf16.msra.mxu0 0
        %555 = vmatprep.subr.bf16.mxu0 0
        %556 = vmatpush1.bf16.msra.mxu0 0
        %557 = vmatprep.subr.bf16.mxu0 0
        %558 = vmatpush1.bf16.msra.mxu0 0
        %559 = vmatprep.subr.bf16.mxu0 0
        %560 = vmatpush1.bf16.msra.mxu0 0
        %561 = vmatprep.subr.bf16.mxu0 0
        %562 = vmatpush1.bf16.msra.mxu0 %v545
        %563 = vmatprep.subr.bf16.mxu0 0
        %564 = vmatpush2.bf16.msra.mxu0 0
        %565 = vmatprep.subr.bf16.mxu0 0
        %566 = vmatpush2.bf16.msra.mxu0 0
        %567 = vmatprep.subr.bf16.mxu0 0
        %568 = vmatpush2.bf16.msra.mxu0 0
        %569 = vmatprep.subr.bf16.mxu0 0
        %570 = vmatpush2.bf16.msra.mxu0 0
        %571 = vmatprep.subr.bf16.mxu0 0
        %572 = vmatpush2.bf16.msra.mxu0 0
        %573 = vmatprep.subr.bf16.mxu0 0
        %574 = vmatpush2.bf16.msra.mxu0 0
        %575 = vmatprep.subr.bf16.mxu0 0
        %576 = vmatpush2.bf16.msra.mxu0 0
        %577 = vmatprep.subr.bf16.mxu0 0
        %578 = vmatpush2.bf16.msra.mxu0 0
        %579 = vmatprep.mubr.bf16.mxu0 0
        %580 = vmatmul.mubr.bf16.gmra.mxu0 %v541
        %v581 = vpop.f32.mrf.mxu0
        %v582 = vadd.f32 0.0, %v581
        %v583 = vpop.f32.mrf.mxu0
        %v584 = vpop.f32.mrf.mxu0
        %v585 = vpop.f32.mrf.mxu0
        %586 = vdwg.mxu0
        %588 = vrot.lane.b32.xlu0 %v476, 120
        %v589 = vpop.permute.xlu0 %588
        %590 = vrot.lane.b32.xlu0 %v477, 120
        %v591 = vpop.permute.xlu0 %590
        %v593 = vsel %vm478, %v589, 0
        %v596 = vsel %vm478, %v591, 0
        %598 = vmatprep.subr.bf16.mxu0 0
        %599 = vmatpush1.bf16.xpose.msra.mxu0 0
        %600 = vmatprep.subr.bf16.mxu0 0
        %601 = vmatpush1.bf16.xpose.msra.mxu0 0
        %602 = vmatprep.subr.bf16.mxu0 0
        %603 = vmatpush1.bf16.xpose.msra.mxu0 0
        %604 = vmatprep.subr.bf16.mxu0 0
        %605 = vmatpush1.bf16.xpose.msra.mxu0 0
        %606 = vmatprep.subr.bf16.mxu0 0
        %607 = vmatpush1.bf16.xpose.msra.mxu0 0
        %608 = vmatprep.subr.bf16.mxu0 0
        %609 = vmatpush1.bf16.xpose.msra.mxu0 0
        %610 = vmatprep.subr.bf16.mxu0 0
        %611 = vmatpush1.bf16.xpose.msra.mxu0 0
        %612 = vmatprep.subr.bf16.mxu0 0
        %613 = vmatpush1.bf16.xpose.msra.mxu0 %v596
        %614 = vmatprep.subr.bf16.mxu0 0
        %615 = vmatpush2.bf16.xpose.msra.mxu0 0
        %616 = vmatprep.subr.bf16.mxu0 0
        %617 = vmatpush2.bf16.xpose.msra.mxu0 0
        %618 = vmatprep.subr.bf16.mxu0 0
        %619 = vmatpush2.bf16.xpose.msra.mxu0 0
        %620 = vmatprep.subr.bf16.mxu0 0
        %621 = vmatpush2.bf16.xpose.msra.mxu0 0
        %622 = vmatprep.subr.bf16.mxu0 0
        %623 = vmatpush2.bf16.xpose.msra.mxu0 0
        %624 = vmatprep.subr.bf16.mxu0 0
        %625 = vmatpush2.bf16.xpose.msra.mxu0 0
        %626 = vmatprep.subr.bf16.mxu0 0
        %627 = vmatpush2.bf16.xpose.msra.mxu0 0
        %628 = vmatprep.subr.bf16.mxu0 0
        %629 = vmatpush2.bf16.xpose.msra.mxu0 0
        %630 = vmatprep.mubr.bf16.mxu0 0
        %631 = vmatmul.mubr.bf16.gmra.mxu0 %v593
        %v632 = vpop.f32.mrf.mxu0
        %v633 = vadd.f32 0.0, %v632
        %v634 = vpop.f32.mrf.mxu0
        %v635 = vpop.f32.mrf.mxu0
        %v636 = vpop.f32.mrf.mxu0
        %637 = vdwg.mxu0
        %v638 = vsel %vm478, %v633, -inf
        %639 = vmax.xlane.f32.xlu0 %v638
        %v640 = vpop.xlane.xlu0 %639
        %v641 = vsub.f32 %v633, %v640
        %v642 = vmul.f32 %v641, 1.442695
        %v643 = vpow.pop %v642
        %v644 = vsel %vm478, %v643, 0.0
        %645 = vadd.xlane.f32.xlu0 %v644
        %v646 = vpop.xlane.xlu0 %645
        %v647 = vrcp.pop %v646
        %v648 = vmul.f32 %v643, %v647
        %v649 = vpack.c.bf16 %v648, %v648
        %650 = vrot.lane.b32.xlu0 %v477, 88
        %v651 = vpop.permute.xlu0 %650
        %v653 = vsel %vm478, %v649, 0
        %v656 = vsel %vm543, %v651, 0
        %658 = vmatprep.subr.bf16.mxu0 0
        %659 = vmatpush1.bf16.msra.mxu0 0
        %660 = vmatprep.subr.bf16.mxu0 0
        %661 = vmatpush1.bf16.msra.mxu0 0
        %662 = vmatprep.subr.bf16.mxu0 0
        %663 = vmatpush1.bf16.msra.mxu0 0
        %664 = vmatprep.subr.bf16.mxu0 0
        %665 = vmatpush1.bf16.msra.mxu0 0
        %666 = vmatprep.subr.bf16.mxu0 0
        %667 = vmatpush1.bf16.msra.mxu0 0
        %668 = vmatprep.subr.bf16.mxu0 0
        %669 = vmatpush1.bf16.msra.mxu0 0
        %670 = vmatprep.subr.bf16.mxu0 0
        %671 = vmatpush1.bf16.msra.mxu0 0
        %672 = vmatprep.subr.bf16.mxu0 0
        %673 = vmatpush1.bf16.msra.mxu0 %v656
        %674 = vmatprep.subr.bf16.mxu0 0
        %675 = vmatpush2.bf16.msra.mxu0 0
        %676 = vmatprep.subr.bf16.mxu0 0
        %677 = vmatpush2.bf16.msra.mxu0 0
        %678 = vmatprep.subr.bf16.mxu0 0
        %679 = vmatpush2.bf16.msra.mxu0 0
        %680 = vmatprep.subr.bf16.mxu0 0
        %681 = vmatpush2.bf16.msra.mxu0 0
        %682 = vmatprep.subr.bf16.mxu0 0
        %683 = vmatpush2.bf16.msra.mxu0 0
        %684 = vmatprep.subr.bf16.mxu0 0
        %685 = vmatpush2.bf16.msra.mxu0 0
        %686 = vmatprep.subr.bf16.mxu0 0
        %687 = vmatpush2.bf16.msra.mxu0 0
        %688 = vmatprep.subr.bf16.mxu0 0
        %689 = vmatpush2.bf16.msra.mxu0 0
        %690 = vmatprep.mubr.bf16.mxu0 0
        %691 = vmatmul.mubr.bf16.gmra.mxu0 %v653
        %v692 = vpop.f32.mrf.mxu0
        %v693 = vadd.f32 0.0, %v692
        %v694 = vpop.f32.mrf.mxu0
        %v695 = vpop.f32.mrf.mxu0
        %v696 = vpop.f32.mrf.mxu0
        %697 = vdwg.mxu0
        %698 = vrot.lane.b32.xlu0 %v476, 112
        %v699 = vpop.permute.xlu0 %698
        %700 = vrot.lane.b32.xlu0 %v477, 112
        %v701 = vpop.permute.xlu0 %700
        %v703 = vsel %vm478, %v699, 0
        %v706 = vsel %vm478, %v701, 0
        %708 = vmatprep.subr.bf16.mxu0 0
        %709 = vmatpush1.bf16.xpose.msra.mxu0 0
        %710 = vmatprep.subr.bf16.mxu0 0
        %711 = vmatpush1.bf16.xpose.msra.mxu0 0
        %712 = vmatprep.subr.bf16.mxu0 0
        %713 = vmatpush1.bf16.xpose.msra.mxu0 0
        %714 = vmatprep.subr.bf16.mxu0 0
        %715 = vmatpush1.bf16.xpose.msra.mxu0 0
        %716 = vmatprep.subr.bf16.mxu0 0
        %717 = vmatpush1.bf16.xpose.msra.mxu0 0
        %718 = vmatprep.subr.bf16.mxu0 0
        %719 = vmatpush1.bf16.xpose.msra.mxu0 0
        %720 = vmatprep.subr.bf16.mxu0 0
        %721 = vmatpush1.bf16.xpose.msra.mxu0 0
        %722 = vmatprep.subr.bf16.mxu0 0
        %723 = vmatpush1.bf16.xpose.msra.mxu0 %v706
        %724 = vmatprep.subr.bf16.mxu0 0
        %725 = vmatpush2.bf16.xpose.msra.mxu0 0
        %726 = vmatprep.subr.bf16.mxu0 0
        %727 = vmatpush2.bf16.xpose.msra.mxu0 0
        %728 = vmatprep.subr.bf16.mxu0 0
        %729 = vmatpush2.bf16.xpose.msra.mxu0 0
        %730 = vmatprep.subr.bf16.mxu0 0
        %731 = vmatpush2.bf16.xpose.msra.mxu0 0
        %732 = vmatprep.subr.bf16.mxu0 0
        %733 = vmatpush2.bf16.xpose.msra.mxu0 0
        %734 = vmatprep.subr.bf16.mxu0 0
        %735 = vmatpush2.bf16.xpose.msra.mxu0 0
        %736 = vmatprep.subr.bf16.mxu0 0
        %737 = vmatpush2.bf16.xpose.msra.mxu0 0
        %738 = vmatprep.subr.bf16.mxu0 0
        %739 = vmatpush2.bf16.xpose.msra.mxu0 0
        %740 = vmatprep.mubr.bf16.mxu0 0
        %741 = vmatmul.mubr.bf16.gmra.mxu0 %v703
        %v742 = vpop.f32.mrf.mxu0
        %v743 = vadd.f32 0.0, %v742
        %v744 = vpop.f32.mrf.mxu0
        %v745 = vpop.f32.mrf.mxu0
        %v746 = vpop.f32.mrf.mxu0
        %747 = vdwg.mxu0
        %v748 = vsel %vm478, %v743, -inf
        %749 = vmax.xlane.f32.xlu0 %v748
        %v750 = vpop.xlane.xlu0 %749
        %v751 = vsub.f32 %v743, %v750
        %v752 = vmul.f32 %v751, 1.442695
        %v753 = vpow.pop %v752
        %v754 = vsel %vm478, %v753, 0.0
        %755 = vadd.xlane.f32.xlu0 %v754
        %v756 = vpop.xlane.xlu0 %755
        %v757 = vrcp.pop %v756
        %v758 = vmul.f32 %v753, %v757
        %v759 = vpack.c.bf16 %v758, %v758
        %760 = vrot.lane.b32.xlu0 %v477, 80
        %v761 = vpop.permute.xlu0 %760
        %v763 = vsel %vm478, %v759, 0
        %v766 = vsel %vm543, %v761, 0
        %768 = vmatprep.subr.bf16.mxu0 0
        %769 = vmatpush1.bf16.msra.mxu0 0
        %770 = vmatprep.subr.bf16.mxu0 0
        %771 = vmatpush1.bf16.msra.mxu0 0
        %772 = vmatprep.subr.bf16.mxu0 0
        %773 = vmatpush1.bf16.msra.mxu0 0
        %774 = vmatprep.subr.bf16.mxu0 0
        %775 = vmatpush1.bf16.msra.mxu0 0
        %776 = vmatprep.subr.bf16.mxu0 0
        %777 = vmatpush1.bf16.msra.mxu0 0
        %778 = vmatprep.subr.bf16.mxu0 0
        %779 = vmatpush1.bf16.msra.mxu0 0
        %780 = vmatprep.subr.bf16.mxu0 0
        %781 = vmatpush1.bf16.msra.mxu0 0
        %782 = vmatprep.subr.bf16.mxu0 0
        %783 = vmatpush1.bf16.msra.mxu0 %v766
        %784 = vmatprep.subr.bf16.mxu0 0
        %785 = vmatpush2.bf16.msra.mxu0 0
        %786 = vmatprep.subr.bf16.mxu0 0
        %787 = vmatpush2.bf16.msra.mxu0 0
        %788 = vmatprep.subr.bf16.mxu0 0
        %789 = vmatpush2.bf16.msra.mxu0 0
        %790 = vmatprep.subr.bf16.mxu0 0
        %791 = vmatpush2.bf16.msra.mxu0 0
        %792 = vmatprep.subr.bf16.mxu0 0
        %793 = vmatpush2.bf16.msra.mxu0 0
        %794 = vmatprep.subr.bf16.mxu0 0
        %795 = vmatpush2.bf16.msra.mxu0 0
        %796 = vmatprep.subr.bf16.mxu0 0
        %797 = vmatpush2.bf16.msra.mxu0 0
        %798 = vmatprep.subr.bf16.mxu0 0
        %799 = vmatpush2.bf16.msra.mxu0 0
        %800 = vmatprep.mubr.bf16.mxu0 0
        %801 = vmatmul.mubr.bf16.gmra.mxu0 %v763
        %v802 = vpop.f32.mrf.mxu0
        %v803 = vadd.f32 0.0, %v802
        %v804 = vpop.f32.mrf.mxu0
        %v805 = vpop.f32.mrf.mxu0
        %v806 = vpop.f32.mrf.mxu0
        %807 = vdwg.mxu0
        %808 = vrot.lane.b32.xlu0 %v476, 104
        %v809 = vpop.permute.xlu0 %808
        %810 = vrot.lane.b32.xlu0 %v477, 104
        %v811 = vpop.permute.xlu0 %810
        %v813 = vsel %vm478, %v809, 0
        %v816 = vsel %vm478, %v811, 0
        %818 = vmatprep.subr.bf16.mxu0 0
        %819 = vmatpush1.bf16.xpose.msra.mxu0 0
        %820 = vmatprep.subr.bf16.mxu0 0
        %821 = vmatpush1.bf16.xpose.msra.mxu0 0
        %822 = vmatprep.subr.bf16.mxu0 0
        %823 = vmatpush1.bf16.xpose.msra.mxu0 0
        %824 = vmatprep.subr.bf16.mxu0 0
        %825 = vmatpush1.bf16.xpose.msra.mxu0 0
        %826 = vmatprep.subr.bf16.mxu0 0
        %827 = vmatpush1.bf16.xpose.msra.mxu0 0
        %828 = vmatprep.subr.bf16.mxu0 0
        %829 = vmatpush1.bf16.xpose.msra.mxu0 0
        %830 = vmatprep.subr.bf16.mxu0 0
        %831 = vmatpush1.bf16.xpose.msra.mxu0 0
        %832 = vmatprep.subr.bf16.mxu0 0
        %833 = vmatpush1.bf16.xpose.msra.mxu0 %v816
        %834 = vmatprep.subr.bf16.mxu0 0
        %835 = vmatpush2.bf16.xpose.msra.mxu0 0
        %836 = vmatprep.subr.bf16.mxu0 0
        %837 = vmatpush2.bf16.xpose.msra.mxu0 0
        %838 = vmatprep.subr.bf16.mxu0 0
        %839 = vmatpush2.bf16.xpose.msra.mxu0 0
        %840 = vmatprep.subr.bf16.mxu0 0
        %841 = vmatpush2.bf16.xpose.msra.mxu0 0
        %842 = vmatprep.subr.bf16.mxu0 0
        %843 = vmatpush2.bf16.xpose.msra.mxu0 0
        %844 = vmatprep.subr.bf16.mxu0 0
        %845 = vmatpush2.bf16.xpose.msra.mxu0 0
        %846 = vmatprep.subr.bf16.mxu0 0
        %847 = vmatpush2.bf16.xpose.msra.mxu0 0
        %848 = vmatprep.subr.bf16.mxu0 0
        %849 = vmatpush2.bf16.xpose.msra.mxu0 0
        %850 = vmatprep.mubr.bf16.mxu0 0
        %851 = vmatmul.mubr.bf16.gmra.mxu0 %v813
        %v852 = vpop.f32.mrf.mxu0
        %v853 = vadd.f32 0.0, %v852
        %v854 = vpop.f32.mrf.mxu0
        %v855 = vpop.f32.mrf.mxu0
        %v856 = vpop.f32.mrf.mxu0
        %857 = vdwg.mxu0
        %v858 = vsel %vm478, %v853, -inf
        %859 = vmax.xlane.f32.xlu0 %v858
        %v860 = vpop.xlane.xlu0 %859
        %v861 = vsub.f32 %v853, %v860
        %v862 = vmul.f32 %v861, 1.442695
        %v863 = vpow.pop %v862
        %v864 = vsel %vm478, %v863, 0.0
        %865 = vadd.xlane.f32.xlu0 %v864
        %v866 = vpop.xlane.xlu0 %865
        %v867 = vrcp.pop %v866
        %v868 = vmul.f32 %v863, %v867
        %v869 = vpack.c.bf16 %v868, %v868
        %870 = vrot.lane.b32.xlu0 %v477, 72
        %v871 = vpop.permute.xlu0 %870
        %v873 = vsel %vm478, %v869, 0
        %v876 = vsel %vm543, %v871, 0
        %878 = vmatprep.subr.bf16.mxu0 0
        %879 = vmatpush1.bf16.msra.mxu0 0
        %880 = vmatprep.subr.bf16.mxu0 0
        %881 = vmatpush1.bf16.msra.mxu0 0
        %882 = vmatprep.subr.bf16.mxu0 0
        %883 = vmatpush1.bf16.msra.mxu0 0
        %884 = vmatprep.subr.bf16.mxu0 0
        %885 = vmatpush1.bf16.msra.mxu0 0
        %886 = vmatprep.subr.bf16.mxu0 0
        %887 = vmatpush1.bf16.msra.mxu0 0
        %888 = vmatprep.subr.bf16.mxu0 0
        %889 = vmatpush1.bf16.msra.mxu0 0
        %890 = vmatprep.subr.bf16.mxu0 0
        %891 = vmatpush1.bf16.msra.mxu0 0
        %892 = vmatprep.subr.bf16.mxu0 0
        %893 = vmatpush1.bf16.msra.mxu0 %v876
        %894 = vmatprep.subr.bf16.mxu0 0
        %895 = vmatpush2.bf16.msra.mxu0 0
        %896 = vmatprep.subr.bf16.mxu0 0
        %897 = vmatpush2.bf16.msra.mxu0 0
        %898 = vmatprep.subr.bf16.mxu0 0
        %899 = vmatpush2.bf16.msra.mxu0 0
        %900 = vmatprep.subr.bf16.mxu0 0
        %901 = vmatpush2.bf16.msra.mxu0 0
        %902 = vmatprep.subr.bf16.mxu0 0
        %903 = vmatpush2.bf16.msra.mxu0 0
        %904 = vmatprep.subr.bf16.mxu0 0
        %905 = vmatpush2.bf16.msra.mxu0 0
        %906 = vmatprep.subr.bf16.mxu0 0
        %907 = vmatpush2.bf16.msra.mxu0 0
        %908 = vmatprep.subr.bf16.mxu0 0
        %909 = vmatpush2.bf16.msra.mxu0 0
        %910 = vmatprep.mubr.bf16.mxu0 0
        %911 = vmatmul.mubr.bf16.gmra.mxu0 %v873
        %v912 = vpop.f32.mrf.mxu0
        %v913 = vadd.f32 0.0, %v912
        %v914 = vpop.f32.mrf.mxu0
        %v915 = vpop.f32.mrf.mxu0
        %v916 = vpop.f32.mrf.mxu0
        %917 = vdwg.mxu0
        %919 = vrot.lane.b32.xlu0 %v693, 8
        %v920 = vpop.permute.xlu0 %919
        %923 = vrot.lane.b32.xlu0 %v803, 16
        %v924 = vpop.permute.xlu0 %923
        %927 = vrot.lane.b32.xlu0 %v913, 24
        %v928 = vpop.permute.xlu0 %927
        %v930 = vsel %vm478, %v582, %v920
        %vm931 = vcmask 130048
        %v932 = vsel %vm931, %v930, %v924
        %vm933 = vcmask 195584
        %v934 = vsel %vm933, %v932, %v928
        %v935 = vld [vmem:[%s7] sm:$0x1]
        %v936 = vld [vmem:[%s7 + $0x1] sm:$0x1]
        %v937 = vld [vmem:[%s7 + $0x2] sm:$0x1]
        %v938 = vld [vmem:[%s7 + $0x3] sm:$0x1]
        %v939 = vld [vmem:[%s7 + $0x4] sm:$0x1]
        %v940 = vld [vmem:[%s7 + $0x5] sm:$0x1]
        %v941 = vpack.c.bf16 %v934, %v934
        %v942 = vld [vmem:[%s3] sm:$0xf]
        %v943 = vld [vmem:[%s3 + $0x4] sm:$0xf]
        %v944 = vld [vmem:[%s3 + $0x8] sm:$0xf]
        %v945 = vld [vmem:[%s3 + $0xc] sm:$0xf]
        %v946 = vlaneseq
        %v947 = vshrl.u32 %v946, 7
        %v948 = vsub.s32 0, %v947
        %v949 = vrot.slane %v935, %v948
        %v954 = vunpack.c.l.b16 %v942
        %v955 = vunpack.c.l.b16 %v943
        %v956 = vunpack.c.l.b16 %v944
        %v957 = vunpack.c.l.b16 %v945
        %v958 = vpack.c.b16 %v955, %v954
        %v959 = vpack.c.b16 %v957, %v956
        %v963 = vsel %vm379, %v941, 0
        %965 = vmatprep.subr.bf16.mxu0 0
        %966 = vmatpush1.bf16.msra.mxu0 0
        %967 = vmatprep.subr.bf16.mxu0 0
        %968 = vmatpush1.bf16.msra.mxu0 0
        %969 = vmatprep.subr.bf16.mxu0 0
        %970 = vmatpush1.bf16.msra.mxu0 0
        %971 = vmatprep.subr.bf16.mxu0 0
        %972 = vmatpush1.bf16.msra.mxu0 0
        %973 = vmatprep.subr.bf16.mxu0 0
        %974 = vmatpush1.bf16.msra.mxu0 0
        %975 = vmatprep.subr.bf16.mxu0 0
        %976 = vmatpush1.bf16.msra.mxu0 0
        %977 = vmatprep.subr.bf16.mxu0 0
        %978 = vmatpush1.bf16.msra.mxu0 %v959
        %979 = vmatprep.subr.bf16.mxu0 0
        %980 = vmatpush1.bf16.msra.mxu0 %v958
        %981 = vmatprep.subr.bf16.mxu0 0
        %982 = vmatpush2.bf16.msra.mxu0 0
        %983 = vmatprep.subr.bf16.mxu0 0
        %984 = vmatpush2.bf16.msra.mxu0 0
        %985 = vmatprep.subr.bf16.mxu0 0
        %986 = vmatpush2.bf16.msra.mxu0 0
        %987 = vmatprep.subr.bf16.mxu0 0
        %988 = vmatpush2.bf16.msra.mxu0 0
        %989 = vmatprep.subr.bf16.mxu0 0
        %990 = vmatpush2.bf16.msra.mxu0 0
        %991 = vmatprep.subr.bf16.mxu0 0
        %992 = vmatpush2.bf16.msra.mxu0 0
        %993 = vmatprep.subr.bf16.mxu0 0
        %994 = vmatpush2.bf16.msra.mxu0 0
        %995 = vmatprep.subr.bf16.mxu0 0
        %996 = vmatpush2.bf16.msra.mxu0 0
        %997 = vmatprep.mubr.bf16.mxu0 0
        %998 = vmatmul.mubr.bf16.gmra.mxu0 %v963
        %v999 = vpop.f32.mrf.mxu0
        %v1000 = vadd.f32 %v949, %v999
        %v1001 = vpop.f32.mrf.mxu0
        %v1002 = vpop.f32.mrf.mxu0
        %v1003 = vpop.f32.mrf.mxu0
        %1004 = vdwg.mxu0
        %v1005 = vunpack.c.l.bf16 %v355
        %v1006 = vadd.f32 %v1005, %v1000
        %v1007 = vsel %vm379, %v1006, 0.0
        %1008 = vadd.xlane.f32.xlu0 %v1007
        %v1009 = vpop.xlane.xlu0 %1008
        %v1010 = vrcp.pop 32.0
        %v1011 = vmul.f32 %v1009, %v1010
        %v1012 = vsub.f32 %v1006, %v1011
        %v1013 = vmul.f32 %v1012, %v1012
        %v1014 = vsel %vm379, %v1013, 0.0
        %1015 = vadd.xlane.f32.xlu0 %v1014
        %v1016 = vpop.xlane.xlu0 %1015
        %v1017 = vmul.f32 %v1016, %v1010
        %v1018 = vadd.f32 %v1017, 1e-05
        %v1019 = vrsqrt.pop %v1018
        %v1020 = vmul.f32 %v1012, %v1019
        %v1021 = vlaneseq
        %v1022 = vshrl.u32 %v1021, 7
        %v1023 = vsub.s32 0, %v1022
        %v1024 = vrot.slane %v936, %v1023
        %v1025 = vmul.f32 %v1020, %v1024
        %v1026 = vlaneseq
        %v1027 = vshrl.u32 %v1026, 7
        %v1028 = vsub.s32 0, %v1027
        %v1029 = vrot.slane %v937, %v1028
        %v1030 = vadd.f32 %v1025, %v1029
        %v1031 = vpack.c.bf16 %v1030, %v1030
        %v1032 = vld [vmem:[%s4] sm:$0xf]
        %v1033 = vld [vmem:[%s4 + $0x4] sm:$0xf]
        %v1034 = vld [vmem:[%s4 + $0x8] sm:$0xf]
        %v1035 = vld [vmem:[%s4 + $0xc] sm:$0xf]
        %v1036 = vld [vmem:[#allocation5] sm:$0x1]
        %v1038 = vlaneseq
        %v1039 = vshrl.u32 %v1038, 7
        %v1040 = vsub.s32 0, %v1039
        %v1041 = vrot.slane %v1036, %v1040
        %v1047 = vunpack.c.l.b16 %v1032
        %v1048 = vunpack.c.l.b16 %v1033
        %v1049 = vunpack.c.l.b16 %v1034
        %v1050 = vunpack.c.l.b16 %v1035
        %v1051 = vpack.c.b16 %v1048, %v1047
        %v1052 = vpack.c.b16 %v1050, %v1049
        %v1056 = vsel %vm379, %v1031, 0
        %1058 = vmatprep.subr.bf16.mxu0 0
        %1059 = vmatpush1.bf16.msra.mxu0 0
        %1060 = vmatprep.subr.bf16.mxu0 0
        %1061 = vmatpush1.bf16.msra.mxu0 0
        %1062 = vmatprep.subr.bf16.mxu0 0
        %1063 = vmatpush1.bf16.msra.mxu0 0
        %1064 = vmatprep.subr.bf16.mxu0 0
        %1065 = vmatpush1.bf16.msra.mxu0 0
        %1066 = vmatprep.subr.bf16.mxu0 0
        %1067 = vmatpush1.bf16.msra.mxu0 0
        %1068 = vmatprep.subr.bf16.mxu0 0
        %1069 = vmatpush1.bf16.msra.mxu0 0
        %1070 = vmatprep.subr.bf16.mxu0 0
        %1071 = vmatpush1.bf16.msra.mxu0 %v1052
        %1072 = vmatprep.subr.bf16.mxu0 0
        %1073 = vmatpush1.bf16.msra.mxu0 %v1051
        %1074 = vmatprep.subr.bf16.mxu0 0
        %1075 = vmatpush2.bf16.msra.mxu0 0
        %1076 = vmatprep.subr.bf16.mxu0 0
        %1077 = vmatpush2.bf16.msra.mxu0 0
        %1078 = vmatprep.subr.bf16.mxu0 0
        %1079 = vmatpush2.bf16.msra.mxu0 0
        %1080 = vmatprep.subr.bf16.mxu0 0
        %1081 = vmatpush2.bf16.msra.mxu0 0
        %1082 = vmatprep.subr.bf16.mxu0 0
        %1083 = vmatpush2.bf16.msra.mxu0 0
        %1084 = vmatprep.subr.bf16.mxu0 0
        %1085 = vmatpush2.bf16.msra.mxu0 0
        %1086 = vmatprep.subr.bf16.mxu0 0
        %1087 = vmatpush2.bf16.msra.mxu0 0
        %1088 = vmatprep.subr.bf16.mxu0 0
        %1089 = vmatpush2.bf16.msra.mxu0 0
        %1090 = vmatprep.mubr.bf16.mxu0 0
        %1091 = vmatmul.mubr.bf16.gmra.mxu0 %v1056
        %v1092 = vpop.f32.mrf.mxu0
        %v1093 = vadd.f32 %v1041, %v1092
        %v1094 = vpop.f32.mrf.mxu0
        %v1095 = vpop.f32.mrf.mxu0
        %v1096 = vpop.f32.mrf.mxu0
        %1097 = vdwg.mxu0
        %v1098 = vmax.f32 %v1093, 0.0
        %v1099 = vpack.c.bf16 %v1098, %v1098
        %v1100 = vld [vmem:[%s6] sm:$0xf]
        %v1101 = vld [vmem:[%s6 + $0x4] sm:$0xf]
        %v1102 = vld [vmem:[%s6 + $0x8] sm:$0xf]
        %v1103 = vld [vmem:[%s6 + $0xc] sm:$0xf]
        %v1104 = vld [vmem:[%s6 + $0x10] sm:$0xf]
        %v1105 = vld [vmem:[%s6 + $0x14] sm:$0xf]
        %v1106 = vld [vmem:[%s6 + $0x18] sm:$0xf]
        %v1107 = vld [vmem:[%s6 + $0x1c] sm:$0xf]
        %v1108 = vlaneseq
        %v1109 = vshrl.u32 %v1108, 7
        %v1110 = vsub.s32 0, %v1109
        %v1111 = vrot.slane %v938, %v1110
        %v1120 = vunpack.c.l.b16 %v1100
        %v1121 = vunpack.c.l.b16 %v1101
        %v1122 = vunpack.c.l.b16 %v1102
        %v1123 = vunpack.c.l.b16 %v1103
        %v1124 = vunpack.c.l.b16 %v1104
        %v1125 = vunpack.c.l.b16 %v1105
        %v1126 = vunpack.c.l.b16 %v1106
        %v1127 = vunpack.c.l.b16 %v1107
        %v1128 = vpack.c.b16 %v1121, %v1120
        %v1129 = vpack.c.b16 %v1123, %v1122
        %v1130 = vpack.c.b16 %v1125, %v1124
        %v1131 = vpack.c.b16 %v1127, %v1126
        %vm1136 = vcmask 523264
        %v1138 = vsel %vm1136, %v1099, 0
        %1140 = vmatprep.subr.bf16.mxu0 0
        %1141 = vmatpush1.bf16.msra.mxu0 0
        %1142 = vmatprep.subr.bf16.mxu0 0
        %1143 = vmatpush1.bf16.msra.mxu0 0
        %1144 = vmatprep.subr.bf16.mxu0 0
        %1145 = vmatpush1.bf16.msra.mxu0 0
        %1146 = vmatprep.subr.bf16.mxu0 0
        %1147 = vmatpush1.bf16.msra.mxu0 0
        %1148 = vmatprep.subr.bf16.mxu0 0
        %1149 = vmatpush1.bf16.msra.mxu0 %v1131
        %1150 = vmatprep.subr.bf16.mxu0 0
        %1151 = vmatpush1.bf16.msra.mxu0 %v1130
        %1152 = vmatprep.subr.bf16.mxu0 0
        %1153 = vmatpush1.bf16.msra.mxu0 %v1129
        %1154 = vmatprep.subr.bf16.mxu0 0
        %1155 = vmatpush1.bf16.msra.mxu0 %v1128
        %1156 = vmatprep.subr.bf16.mxu0 0
        %1157 = vmatpush2.bf16.msra.mxu0 0
        %1158 = vmatprep.subr.bf16.mxu0 0
        %1159 = vmatpush2.bf16.msra.mxu0 0
        %1160 = vmatprep.subr.bf16.mxu0 0
        %1161 = vmatpush2.bf16.msra.mxu0 0
        %1162 = vmatprep.subr.bf16.mxu0 0
        %1163 = vmatpush2.bf16.msra.mxu0 0
        %1164 = vmatprep.subr.bf16.mxu0 0
        %1165 = vmatpush2.bf16.msra.mxu0 0
        %1166 = vmatprep.subr.bf16.mxu0 0
        %1167 = vmatpush2.bf16.msra.mxu0 0
        %1168 = vmatprep.subr.bf16.mxu0 0
        %1169 = vmatpush2.bf16.msra.mxu0 0
        %1170 = vmatprep.subr.bf16.mxu0 0
        %1171 = vmatpush2.bf16.msra.mxu0 0
        %1172 = vmatprep.mubr.bf16.mxu0 0
        %1173 = vmatmul.mubr.bf16.gmra.mxu0 %v1138
        %v1174 = vpop.f32.mrf.mxu0
        %v1175 = vadd.f32 %v1111, %v1174
        %v1176 = vpop.f32.mrf.mxu0
        %v1177 = vpop.f32.mrf.mxu0
        %v1178 = vpop.f32.mrf.mxu0
        %1179 = vdwg.mxu0
        %v1180 = vadd.f32 %v1030, %v1175
        %v1181 = vsel %vm379, %v1180, 0.0
        %1182 = vadd.xlane.f32.xlu0 %v1181
        %v1183 = vpop.xlane.xlu0 %1182
        %v1184 = vmul.f32 %v1183, %v1010
        %v1185 = vsub.f32 %v1180, %v1184
        %v1186 = vmul.f32 %v1185, %v1185
        %v1187 = vsel %vm379, %v1186, 0.0
        %1188 = vadd.xlane.f32.xlu0 %v1187
        %v1189 = vpop.xlane.xlu0 %1188
        %v1190 = vmul.f32 %v1189, %v1010
        %v1191 = vadd.f32 %v1190, 1e-05
        %v1192 = vrsqrt.pop %v1191
        %v1193 = vmul.f32 %v1185, %v1192
        %v1194 = vlaneseq
        %v1195 = vshrl.u32 %v1194, 7
        %v1196 = vsub.s32 0, %v1195
        %v1197 = vrot.slane %v939, %v1196
        %v1198 = vmul.f32 %v1193, %v1197
        %v1199 = vlaneseq
        %v1200 = vshrl.u32 %v1199, 7
        %v1201 = vsub.s32 0, %v1200
        %v1202 = vrot.slane %v940, %v1201
        %v1203 = vadd.f32 %v1198, %v1202
        %v1204 = vpack.c.bf16 %v1203, %v1203
        %vm1205 = vcmask 257024
        %1206 = vst.msk [vmem:[%s347] sm:$0xf] %vm1205, %v1204
        %s1207 = sand.u32 %s221, 1
        %s1208 = scalar_lea.sflag [#allocation4], %s1207
        %s1209 = sand.u32 %s221, 1
        %s1210 = smul.addr %s1209, 4
        %s1211 = scalar_lea.vmem [#allocation7], %s1210
        // Predicated region
        $region61: #{tpu_custom_call.1} parent=51 // pred_check
          %p1212 = pneg %p231
        $region62: #{tpu_custom_call.1} parent=51 // pred_check_branch
          %1214 = sbr.rel (%p1212) target = $region64
        $region63: #{tpu_custom_call.1} parent=51 // pred_region
          %s1216 = ssub.s32 64, 64
          %1217 = vsyncadd %s1208, %s1216
          %s1218 = sadd.s32 %s31, %s30
          %s1219 = smul.addr %s1218, 64
          %s1220 = scalar_lea.hbm %s8, %s1219
          %s1222 = sshll.u32 %s1211, 4
          %s1223 = int_to_ptr.vmem [resolvable:$true] %s1222
          %1225 = dma.vmem_to_hbm [thread:$0]  %s1223, 64, %s1220, %s1208
        $region64: #{tpu_custom_call.1} parent=51 // pred_fallthru
          _
      $region52: #{tpu_custom_call.1} parent=5 // pred_fallthru
        _
      %p1226 = scmp.le.s32.totalorder 2, %s21
      // Predicated region
      $region65: #{tpu_custom_call.1} parent=5 // pred_check
        %p1227 = pneg %p1226
      $region66: #{tpu_custom_call.1} parent=5 // pred_check_branch
        %1229 = sbr.rel (%p1227) target = $region68
      $region67: #{tpu_custom_call.1} parent=5 // pred_region
        %s1230 = ssub.s32 %s21, 2
        // Predicated region
        $region69: #{tpu_custom_call.1} parent=67 // pred_check
          %p1231 = pneg %p237
        $region70: #{tpu_custom_call.1} parent=67 // pred_check_branch
          %1233 = sbr.rel (%p1231) target = $region72
        $region71: #{tpu_custom_call.1} parent=67 // pred_region
          %s1234 = sand.u32 %s222, 1
          %s1235 = scalar_lea.sflag [#allocation4], %s1234
          %s1236 = sand.u32 %s222, 1
          %s1237 = smul.addr %s1236, 4
          %s1238 = scalar_lea.vmem [#allocation7], %s1237
          %1239 = dma.done %s1235, 64
        $region72: #{tpu_custom_call.1} parent=67 // pred_fallthru
          _
      $region68: #{tpu_custom_call.1} parent=5 // pred_fallthru
        _
    $region6: #{tpu_custom_call.1} parent=1 // loop_footer
      %s25 = sadd.s32 1, %s21
    $region7: #{tpu_custom_call.1} parent=1 // loop_footer_branch
      %20 = sbr.rel target = $region3
    $region8: #{tpu_custom_call.1} parent=1 // loop_exit
      _
    %1240 = vsyncpa [#allocation3], 1
    %s1241 = scalar_lea.sflag [#allocation3], 1
    %1242 = vsyncpa %s1241, 1
    %1243 = vsyncpa [#allocation6], 1
    %1244 = vsyncpa [#allocation4], 1
    %s1245 = scalar_lea.sflag [#allocation4], 1
    %1246 = vsyncpa %s1245, 1

</llo_original>
